<compile_context>
chip_gen: v6e
topology: v6e:2x2x1
jax: 0.10.0
libtpu: 0.0.40
codegen_flags: <defaults>
</compile_context>

<pallas_src>
import functools

import jax
import jax.numpy as jnp
import numpy as np
from jax.experimental import pallas as pl
from jax.experimental.pallas import tpu as pltpu

_EPS = 1e-5


# --------------------------------- helpers ------------------------------------

def _rup(x, m):
    return -(-int(x) // int(m)) * int(m)


def _vmem_capacity_bytes():
    """Per-core VMEM capacity (v5e/v6e: 128 MiB, v7x: 64 MiB); conservative fallback."""
    try:
        info = pltpu.get_tpu_info()
        cap = int(getattr(info, "vmem_capacity_bytes", 0) or 0)
        if cap > 0:
            return cap
    except Exception:
        pass
    return 64 << 20


def bn_fold(bn, eps=_EPS):
    scale = bn['gamma'] / jnp.sqrt(bn['var'] + eps)
    bias = bn['beta'] - bn['mean'] * scale
    return scale, bias


# ------------------------------ Pallas kernels ---------------------------------

def _emit_conv_tile(load_win, w_ref, bias_ref, o_ref, col_ref, ytmp_ref, *,
                    s, th, wo, cin, cout):
    """Per-tile fused 3x3 conv (BN scale pre-folded into w) + bias + ReLU.

    load_win(qy, ph, qx) -> (th, wo, cin) bf16 unit-stride window of the space-to-depth input.
    w_ref   : (9*cin, cout) bf16    tap-major im2col weights (BN scale folded in)
    bias_ref: (1, cout)     f32
    o_ref   : (th, wo*cout)         lane-dense output slab
    col_ref : (th*wo, 9*cin) bf16   VMEM im2col scratch
    ytmp_ref: (th, wo, cout)        VMEM relayout scratch (output dtype)
    """
    # im2col: pack the 9 shifted windows along K (never touches HBM).
    for dy in range(3):
        for dx in range(3):
            ph = (dy % s) * s + (dx % s)          # which space-to-depth phase
            qy, qx = dy // s, dx // s             # unit-stride shift inside that phase
            k = dy * 3 + dx
            col_ref[:, k * cin:(k + 1) * cin] = load_win(qy, ph, qx).reshape(th * wo, cin)
    # ONE deep-K MXU matmul with f32 accumulation.
    y = jnp.dot(col_ref[...], w_ref[...], preferred_element_type=jnp.float32)
    y = jnp.maximum(y + bias_ref[...], 0.0).astype(o_ref.dtype)
    # Lane-dense store: (th*wo, cout) -> (th, wo*cout) through a small VMEM scratch using only
    # plain ref loads/stores.
    ytmp_ref[...] = y.reshape(th, wo, cout)
    for j in range(wo):
        o_ref[:, j * cout:(j + 1) * cout] = ytmp_ref[:, j, :]


def _conv_kernel_whole(x_ref, w_ref, bias_ref, o_ref, col_ref, ytmp_ref, *,
                       s, th, wo, cin, cout):
    """Whole-image tile: input window delivered by the auto-pipelined BlockSpec."""
    def load_win(qy, ph, qx):
        return x_ref[qy:qy + th, ph, qx:qx + wo, :]
    _emit_conv_tile(load_win, w_ref, bias_ref, o_ref, col_ref, ytmp_ref,
                    s=s, th=th, wo=wo, cin=cin, cout=cout)


def _conv_kernel_tiled(x_hbm, w_ref, bias_ref, o_ref, xbuf, col_ref, ytmp_ref, sem, *,
                       s, th, wo, cin, cout, hq, n_t):
    """Row-tiled path: the phase array stays whole in HBM (pl.ANY); the halo'd row window for
    the current tile is manually DMA'd into a double-buffered VMEM scratch (no wrapper-side HBM
    duplication from overlapping tiles)."""
    n = pl.program_id(0)
    t = pl.program_id(1)
    rows = th + hq
    slot = t % 2

    def start(tile_idx, slot_idx):
        pltpu.make_async_copy(x_hbm.at[n, pl.ds(tile_idx * th, rows)],
                              xbuf.at[slot_idx], sem.at[slot_idx]).start()

    @pl.when(t == 0)
    def _():
        start(0, 0)                       # prime the pipeline for this image

    # Wait for the current tile's window (prefetched during the previous tile, or just issued).
    pltpu.make_async_copy(x_hbm.at[n, pl.ds(t * th, rows)],
                          xbuf.at[slot], sem.at[slot]).wait()

    @pl.when(t + 1 < n_t)
    def _():
        start(t + 1, (t + 1) % 2)         # prefetch the next tile of the SAME image

    def load_win(qy, ph, qx):
        return xbuf[slot, qy:qy + th, ph, qx:qx + wo, :]

    _emit_conv_tile(load_win, w_ref, bias_ref, o_ref, col_ref, ytmp_ref,
                    s=s, th=th, wo=wo, cin=cin, cout=cout)


# --------------------------------- wrapper -------------------------------------

def _block_bytes(t, Wo, Cin, Cout, s2, hq, out_itemsize):
    """Physical VMEM bytes (lane/sublane padding included) of the per-tile buffers."""
    rows = t + hq
    in_b = rows * s2 * _rup(Wo + hq, 16) * _rup(Cin, 128) * 2
    col_b = _rup(t * Wo, 16) * _rup(9 * Cin, 128) * 2
    out_b = _rup(t, 16) * _rup(Wo * Cout, 128) * out_itemsize
    ytmp_b = t * _rup(Wo, 16) * _rup(Cout, 128) * out_itemsize
    return in_b, col_b, out_b, ytmp_b


def _pick_row_tile(Ho, Wo, Cin, Cout, s2, hq, row_tile, out_itemsize, blk_budget):
    def total(t):
        return sum(_block_bytes(t, Wo, Cin, Cout, s2, hq, out_itemsize))
    if row_tile is not None:
        th = max(1, min(int(row_tile), Ho))
    elif total(Ho) <= blk_budget:
        th = Ho
    else:
        th = 16
        while th + 16 <= Ho and total(th + 16) <= blk_budget:
            th += 16
    n_t = -(-Ho // th)
    if n_t > 1:
        th = _rup(th, 16)                 # sublane-aligned row tiles (bf16 and f32 outputs)
        n_t = -(-Ho // th)
    if n_t == 1:
        th = Ho
    return th, n_t


def conv3x3_bn_relu(x_nhwc, w, bn, *, stride, out_dtype, row_tile=None):
    """Fused 3x3 conv (pad=1, stride in {1,2}) + folded BatchNorm + ReLU.

    x_nhwc: (N, H, W, Cin);  w: (Cout, Cin, 3, 3);  bn: dict(gamma, beta, mean, var).
    Returns (N, Ho, Wo, Cout) in out_dtype.
    """
    N, H, W, Cin = map(int, x_nhwc.shape)
    Cout = int(w.shape[0])
    s = int(stride)
    Ho = (H - 1) // s + 1
    Wo = (W - 1) // s + 1
    hq = 2 // s                            # halo in phase-row units (2 for s=1, 1 for s=2)
    s2 = s * s
    Hp, Wp = Ho + hq, Wo + hq
    out_itemsize = jnp.dtype(out_dtype).itemsize

    # ---- BN folding: scale into the bf16 weights; bias stays in the f32 epilogue ----
    scale, bias = bn_fold(bn)
    w9 = jnp.transpose(w * scale[:, None, None, None], (2, 3, 1, 0))       # (3,3,Cin,Cout)
    w9 = w9.reshape(9 * Cin, Cout).astype(jnp.bfloat16)                    # row = (dy*3+dx)*Cin + c
    bs = bias.reshape(1, Cout).astype(jnp.float32)

    # ---- pad + space-to-depth phases: (N, Hp, s2, Wp, Cin); in-kernel windows are unit-stride ----
    xb = x_nhwc.astype(jnp.bfloat16)
    tgt_h, tgt_w = s * Hp, s * Wp
    xp = jnp.pad(xb, ((0, 0), (1, max(0, tgt_h - (H + 1))), (1, max(0, tgt_w - (W + 1))), (0, 0)))
    xp = xp[:, :tgt_h, :tgt_w, :]
    if s == 1:
        xps = xp[:, :, None]                                               # (N, Hp, 1, Wp, C)
    else:
        xps = xp.reshape(N, Hp, s, Wp, s, Cin).transpose(0, 1, 2, 4, 3, 5)
        xps = xps.reshape(N, Hp, s2, Wp, Cin)                              # phase = (dy%s)*s + dx%s

    # ---- generation-aware tiling / VMEM budgeting ----
    cap = _vmem_capacity_bytes()
    blk_budget = max(4 << 20, min(12 << 20, cap // 8))
    th, n_t = _pick_row_tile(Ho, Wo, Cin, Cout, s2, hq, row_tile, out_itemsize, blk_budget)
    Ho_pad = th * n_t
    rows = th + hq
    if n_t > 1 and Ho_pad > Ho:
        xps = jnp.pad(xps, ((0, 0), (0, Ho_pad - Ho), (0, 0), (0, 0), (0, 0)))

    in_b, col_b, out_b, ytmp_b = _block_bytes(th, Wo, Cin, Cout, s2, hq, out_itemsize)
    w_b = _rup(9 * Cin, 16) * _rup(Cout, 128) * 2 + _rup(Cout, 128) * 4
    need = 2 * in_b + 2 * out_b + col_b + ytmp_b + 2 * w_b + (2 << 20)
    vmem_limit = int(min(int(cap * 0.8), max(16 << 20, 2 * need)))
    vmem_limit = max(vmem_limit, need)

    out_shape = jax.ShapeDtypeStruct((N, Ho_pad, Wo * Cout), out_dtype)
    static = dict(s=s, th=th, wo=Wo, cin=Cin, cout=Cout)

    if n_t == 1:
        # Whole image per grid step: plain auto-pipelined (double-buffered) BlockSpecs.
        grid_spec = pltpu.PrefetchScalarGridSpec(
            num_scalar_prefetch=0,
            grid=(N,),
            in_specs=[
                pl.BlockSpec((None, Hp, s2, Wp, Cin), lambda n: (n, 0, 0, 0, 0)),
                pl.BlockSpec((9 * Cin, Cout), lambda n: (0, 0)),
                pl.BlockSpec((1, Cout), lambda n: (0, 0)),
            ],
            out_specs=pl.BlockSpec((None, th, Wo * Cout), lambda n: (n, 0, 0)),
            scratch_shapes=[
                pltpu.VMEM((th * Wo, 9 * Cin), jnp.bfloat16),
                pltpu.VMEM((th, Wo, Cout), out_dtype),
            ])
        kernel = functools.partial(_conv_kernel_whole, **static)
        dims = ("parallel",)
    else:
        # Row-tiled: phase array stays whole in HBM; the kernel DMAs the halo'd window itself.
        grid_spec = pltpu.PrefetchScalarGridSpec(
            num_scalar_prefetch=0,
            grid=(N, n_t),
            in_specs=[
                pl.BlockSpec(memory_space=pl.ANY),
                pl.BlockSpec((9 * Cin, Cout), lambda n, t: (0, 0)),
                pl.BlockSpec((1, Cout), lambda n, t: (0, 0)),
            ],
            out_specs=pl.BlockSpec((None, th, Wo * Cout), lambda n, t: (n, t, 0)),
            scratch_shapes=[
                pltpu.VMEM((2, rows, s2, Wp, Cin), jnp.bfloat16),
                pltpu.VMEM((th * Wo, 9 * Cin), jnp.bfloat16),
                pltpu.VMEM((th, Wo, Cout), out_dtype),
                pltpu.SemaphoreType.DMA((2,)),
            ])
        kernel = functools.partial(_conv_kernel_tiled, hq=hq, n_t=n_t, **static)
        dims = ("parallel", "arbitrary")

    out = pl.pallas_call(
        kernel,
        out_shape=out_shape,
        grid_spec=grid_spec,
        compiler_params=pltpu.CompilerParams(
            dimension_semantics=dims, vmem_limit_bytes=vmem_limit),
    )(xps, w9, bs)

    return out[:, :Ho].reshape(N, Ho, Wo, Cout)


# ------------------------------ block forward ----------------------------------

def vanilla_block(x_nchw, p, *, row_tile=None):
    """VanillaBlock forward: [3x3 conv(stride), BN, ReLU] -> [3x3 conv(1), BN, ReLU]."""
    x = jnp.transpose(x_nchw, (0, 2, 3, 1))                                # NCHW -> NHWC
    h = conv3x3_bn_relu(x, p['wa'], p['a_bn'], stride=p['stride'],
                        out_dtype=jnp.bfloat16, row_tile=row_tile)         # bf16 intermediate
    # TODO(synk): optionally fuse both convs into one kernel keeping `h` in VMEM (per-tile halo
    # recompute) to remove the intermediate's HBM round trip entirely.
    y = conv3x3_bn_relu(h, p['wb'], p['b_bn'], stride=1,
                        out_dtype=jnp.float32, row_tile=row_tile)
    return jnp.transpose(y, (0, 3, 1, 2))                                  # back to NCHW


def make_params(key, w_in, w_out, stride):
    ks = jax.random.split(key, 4)

    def nrm(k, shape, s=0.2):
        return (s * jax.random.normal(k, shape)).astype(jnp.float32)

    def bn_init(k, c):
        k1, k2, k3, k4 = jax.random.split(k, 4)
        return dict(gamma=1.0 + nrm(k1, (c,), 0.1), beta=nrm(k2, (c,), 0.1),
                    mean=nrm(k3, (c,), 0.1), var=0.5 + jnp.abs(nrm(k4, (c,), 0.2)))

    return dict(stride=stride,
                wa=nrm(ks[0], (w_out, w_in, 3, 3)), a_bn=bn_init(ks[1], w_out),
                wb=nrm(ks[2], (w_out, w_out, 3, 3)), b_bn=bn_init(ks[3], w_out))


# --------------------- reference (same bf16/f32 precision policy) ---------------

def ref_forward(x, p):
    """Pure-XLA reference mirroring the kernel's precision policy: BN scale folded into bf16
    conv weights, f32 accumulation, f32 bias + ReLU, bf16 intermediate activation."""
    def stage(x_, w_, bn, stride):
        scale, bias = bn_fold(bn)
        wf = (w_ * scale[:, None, None, None]).astype(jnp.bfloat16)
        y = jax.lax.conv_general_dilated(
            x_.astype(jnp.bfloat16), wf, (stride, stride), [(1, 1), (1, 1)],
            dimension_numbers=('NCHW', 'OIHW', 'NCHW'),
            preferred_element_type=jnp.float32)
        return jax.nn.relu(y + bias[None, :, None, None])

    h = stage(x, p['wa'], p['a_bn'], p['stride']).astype(jnp.bfloat16)
    return stage(h, p['wb'], p['b_bn'], 1)


# ----------------------------------- main ---------------------------------------

if __name__ == "__main__":
    key = jax.random.PRNGKey(0)
    kx1, kx2, kp1, kp2 = jax.random.split(key, 4)

    # Config 1: stride-2 downsampling block.  Whole-image tiles -> auto-pipelined BlockSpec path
    # (exercises the space-to-depth phase decomposition).
    x1 = jax.random.normal(kx1, (2, 8, 16, 16), jnp.float32)
    p1 = make_params(kp1, w_in=8, w_out=16, stride=2)
    out1 = jax.block_until_ready(vanilla_block(x1, p1))
    ref1 = jax.block_until_ready(ref_forward(x1, p1))
    assert out1.shape == (2, 16, 8, 8)
    np.testing.assert_allclose(np.asarray(out1), np.asarray(ref1), rtol=1e-2, atol=1e-2)

    # Config 2: stride-1 block with explicit row tiling -> row-tiled manual-DMA path
    # (grid = (N, 2) per conv, halo'd window double-buffered from HBM).
    x2 = jax.random.normal(kx2, (2, 16, 32, 32), jnp.float32)
    p2 = make_params(kp2, w_in=16, w_out=32, stride=1)
    out2 = jax.block_until_ready(vanilla_block(x2, p2, row_tile=16))
    ref2 = jax.block_until_ready(ref_forward(x2, p2))
    assert out2.shape == (2, 32, 32, 32)
    np.testing.assert_allclose(np.asarray(out2), np.asarray(ref2), rtol=1e-2, atol=1e-2)

    print("KERNEL_OK")
</pallas_src>

<mosaic_0001>
module attributes {stable_mosaic.version = 11 : i64} {
  func.func @_conv_kernel_whole(%arg0: i32, %arg1: memref<1x9x4x9x8xbf16, #tpu.memory_space<vmem>>, %arg2: memref<72x16xbf16, #tpu.memory_space<vmem>>, %arg3: memref<1x16xf32, #tpu.memory_space<vmem>>, %arg4: memref<1x8x128xbf16, #tpu.memory_space<vmem>>, %arg5: memref<64x72xbf16, #tpu.memory_space<vmem>>, %arg6: memref<8x8x16xbf16, #tpu.memory_space<vmem>>) attributes {dimension_semantics = [#tpu.dimension_semantics<parallel>], iteration_bounds = array<i64: 2>, scalar_prefetch = 0 : i64, scratch_operands = 2 : i64, tpu.core_type = #tpu.core_type<tc>, window_params = [{transform_indices = @transform_0, window_bounds = array<i64: 1, 9, 4, 9, 8>}, {pipeline_mode = #tpu.pipeline_mode<synchronous>, transform_indices = @transform_1, window_bounds = array<i64: 72, 16>}, {pipeline_mode = #tpu.pipeline_mode<synchronous>, transform_indices = @transform_2, window_bounds = array<i64: 1, 16>}, {transform_indices = @transform_3, window_bounds = array<i64: 1, 8, 128>}]} {
    %c0 = arith.constant 0 : index
    %c0_0 = arith.constant 0 : index
    %c0_1 = arith.constant 0 : index
    %c0_2 = arith.constant 0 : index
    %c0_3 = arith.constant 0 : index
    %0 = vector.load %arg1[%c0, %c0_0, %c0_1, %c0_2, %c0_3] : memref<1x9x4x9x8xbf16, #tpu.memory_space<vmem>>, vector<1x8x1x8x8xbf16>
    %1 = vector.shape_cast %0 : vector<1x8x1x8x8xbf16> to vector<8x8x8xbf16>
    %2 = vector.shape_cast %1 : vector<8x8x8xbf16> to vector<64x8xbf16>
    %c0_4 = arith.constant 0 : index
    %c0_5 = arith.constant 0 : index
    %3 = vector.load %arg5[%c0_4, %c0_5] : memref<64x72xbf16, #tpu.memory_space<vmem>>, vector<64x8xbf16>
    tpu.vector_store %arg5[%c0_4, %c0_5], %2 {strides = array<i32>} : memref<64x72xbf16, #tpu.memory_space<vmem>>, vector<64x8xbf16>,
    %c0_6 = arith.constant 0 : index
    %c0_7 = arith.constant 0 : index
    %c1 = arith.constant 1 : index
    %c0_8 = arith.constant 0 : index
    %c0_9 = arith.constant 0 : index
    %4 = vector.load %arg1[%c0_6, %c0_7, %c1, %c0_8, %c0_9] : memref<1x9x4x9x8xbf16, #tpu.memory_space<vmem>>, vector<1x8x1x8x8xbf16>
    %5 = vector.shape_cast %4 : vector<1x8x1x8x8xbf16> to vector<8x8x8xbf16>
    %6 = vector.shape_cast %5 : vector<8x8x8xbf16> to vector<64x8xbf16>
    %c0_10 = arith.constant 0 : index
    %c8 = arith.constant 8 : index
    %7 = vector.load %arg5[%c0_10, %c8] : memref<64x72xbf16, #tpu.memory_space<vmem>>, vector<64x8xbf16>
    tpu.vector_store %arg5[%c0_10, %c8], %6 {strides = array<i32>} : memref<64x72xbf16, #tpu.memory_space<vmem>>, vector<64x8xbf16>,
    %c0_11 = arith.constant 0 : index
    %c0_12 = arith.constant 0 : index
    %c0_13 = arith.constant 0 : index
    %c1_14 = arith.constant 1 : index
    %c0_15 = arith.constant 0 : index
    %8 = vector.load %arg1[%c0_11, %c0_12, %c0_13, %c1_14, %c0_15] : memref<1x9x4x9x8xbf16, #tpu.memory_space<vmem>>, vector<1x8x1x8x8xbf16>
    %9 = vector.shape_cast %8 : vector<1x8x1x8x8xbf16> to vector<8x8x8xbf16>
    %10 = vector.shape_cast %9 : vector<8x8x8xbf16> to vector<64x8xbf16>
    %c0_16 = arith.constant 0 : index
    %c16 = arith.constant 16 : index
    %11 = vector.load %arg5[%c0_16, %c16] : memref<64x72xbf16, #tpu.memory_space<vmem>>, vector<64x8xbf16>
    tpu.vector_store %arg5[%c0_16, %c16], %10 {strides = array<i32>} : memref<64x72xbf16, #tpu.memory_space<vmem>>, vector<64x8xbf16>,
    %c0_17 = arith.constant 0 : index
    %c0_18 = arith.constant 0 : index
    %c2 = arith.constant 2 : index
    %c0_19 = arith.constant 0 : index
    %c0_20 = arith.constant 0 : index
    %12 = vector.load %arg1[%c0_17, %c0_18, %c2, %c0_19, %c0_20] : memref<1x9x4x9x8xbf16, #tpu.memory_space<vmem>>, vector<1x8x1x8x8xbf16>
    %13 = vector.shape_cast %12 : vector<1x8x1x8x8xbf16> to vector<8x8x8xbf16>
    %14 = vector.shape_cast %13 : vector<8x8x8xbf16> to vector<64x8xbf16>
    %c0_21 = arith.constant 0 : index
    %c24 = arith.constant 24 : index
    %15 = vector.load %arg5[%c0_21, %c24] : memref<64x72xbf16, #tpu.memory_space<vmem>>, vector<64x8xbf16>
    tpu.vector_store %arg5[%c0_21, %c24], %14 {strides = array<i32>} : memref<64x72xbf16, #tpu.memory_space<vmem>>, vector<64x8xbf16>,
    %c0_22 = arith.constant 0 : index
    %c0_23 = arith.constant 0 : index
    %c3 = arith.constant 3 : index
    %c0_24 = arith.constant 0 : index
    %c0_25 = arith.constant 0 : index
    %16 = vector.load %arg1[%c0_22, %c0_23, %c3, %c0_24, %c0_25] : memref<1x9x4x9x8xbf16, #tpu.memory_space<vmem>>, vector<1x8x1x8x8xbf16>
    %17 = vector.shape_cast %16 : vector<1x8x1x8x8xbf16> to vector<8x8x8xbf16>
    %18 = vector.shape_cast %17 : vector<8x8x8xbf16> to vector<64x8xbf16>
    %c0_26 = arith.constant 0 : index
    %c32 = arith.constant 32 : index
    %19 = vector.load %arg5[%c0_26, %c32] : memref<64x72xbf16, #tpu.memory_space<vmem>>, vector<64x8xbf16>
    tpu.vector_store %arg5[%c0_26, %c32], %18 {strides = array<i32>} : memref<64x72xbf16, #tpu.memory_space<vmem>>, vector<64x8xbf16>,
    %c0_27 = arith.constant 0 : index
    %c0_28 = arith.constant 0 : index
    %c2_29 = arith.constant 2 : index
    %c1_30 = arith.constant 1 : index
    %c0_31 = arith.constant 0 : index
    %20 = vector.load %arg1[%c0_27, %c0_28, %c2_29, %c1_30, %c0_31] : memref<1x9x4x9x8xbf16, #tpu.memory_space<vmem>>, vector<1x8x1x8x8xbf16>
    %21 = vector.shape_cast %20 : vector<1x8x1x8x8xbf16> to vector<8x8x8xbf16>
    %22 = vector.shape_cast %21 : vector<8x8x8xbf16> to vector<64x8xbf16>
    %c0_32 = arith.constant 0 : index
    %c40 = arith.constant 40 : index
    %23 = vector.load %arg5[%c0_32, %c40] : memref<64x72xbf16, #tpu.memory_space<vmem>>, vector<64x8xbf16>
    tpu.vector_store %arg5[%c0_32, %c40], %22 {strides = array<i32>} : memref<64x72xbf16, #tpu.memory_space<vmem>>, vector<64x8xbf16>,
    %c0_33 = arith.constant 0 : index
    %c1_34 = arith.constant 1 : index
    %c0_35 = arith.constant 0 : index
    %c0_36 = arith.constant 0 : index
    %c0_37 = arith.constant 0 : index
    %24 = vector.load %arg1[%c0_33, %c1_34, %c0_35, %c0_36, %c0_37] : memref<1x9x4x9x8xbf16, #tpu.memory_space<vmem>>, vector<1x8x1x8x8xbf16>
    %25 = vector.shape_cast %24 : vector<1x8x1x8x8xbf16> to vector<8x8x8xbf16>
    %26 = vector.shape_cast %25 : vector<8x8x8xbf16> to vector<64x8xbf16>
    %c0_38 = arith.constant 0 : index
    %c48 = arith.constant 48 : index
    %27 = vector.load %arg5[%c0_38, %c48] : memref<64x72xbf16, #tpu.memory_space<vmem>>, vector<64x8xbf16>
    tpu.vector_store %arg5[%c0_38, %c48], %26 {strides = array<i32>} : memref<64x72xbf16, #tpu.memory_space<vmem>>, vector<64x8xbf16>,
    %c0_39 = arith.constant 0 : index
    %c1_40 = arith.constant 1 : index
    %c1_41 = arith.constant 1 : index
    %c0_42 = arith.constant 0 : index
    %c0_43 = arith.constant 0 : index
    %28 = vector.load %arg1[%c0_39, %c1_40, %c1_41, %c0_42, %c0_43] : memref<1x9x4x9x8xbf16, #tpu.memory_space<vmem>>, vector<1x8x1x8x8xbf16>
    %29 = vector.shape_cast %28 : vector<1x8x1x8x8xbf16> to vector<8x8x8xbf16>
    %30 = vector.shape_cast %29 : vector<8x8x8xbf16> to vector<64x8xbf16>
    %c0_44 = arith.constant 0 : index
    %c56 = arith.constant 56 : index
    %31 = vector.load %arg5[%c0_44, %c56] : memref<64x72xbf16, #tpu.memory_space<vmem>>, vector<64x8xbf16>
    tpu.vector_store %arg5[%c0_44, %c56], %30 {strides = array<i32>} : memref<64x72xbf16, #tpu.memory_space<vmem>>, vector<64x8xbf16>,
    %c0_45 = arith.constant 0 : index
    %c1_46 = arith.constant 1 : index
    %c0_47 = arith.constant 0 : index
    %c1_48 = arith.constant 1 : index
    %c0_49 = arith.constant 0 : index
    %32 = vector.load %arg1[%c0_45, %c1_46, %c0_47, %c1_48, %c0_49] : memref<1x9x4x9x8xbf16, #tpu.memory_space<vmem>>, vector<1x8x1x8x8xbf16>
    %33 = vector.shape_cast %32 : vector<1x8x1x8x8xbf16> to vector<8x8x8xbf16>
    %34 = vector.shape_cast %33 : vector<8x8x8xbf16> to vector<64x8xbf16>
    %c0_50 = arith.constant 0 : index
    %c64 = arith.constant 64 : index
    %35 = vector.load %arg5[%c0_50, %c64] : memref<64x72xbf16, #tpu.memory_space<vmem>>, vector<64x8xbf16>
    tpu.vector_store %arg5[%c0_50, %c64], %34 {strides = array<i32>} : memref<64x72xbf16, #tpu.memory_space<vmem>>, vector<64x8xbf16>,
    %c0_51 = arith.constant 0 : index
    %c0_52 = arith.constant 0 : index
    %36 = vector.load %arg5[%c0_51, %c0_52] : memref<64x72xbf16, #tpu.memory_space<vmem>>, vector<64x72xbf16>
    %c0_53 = arith.constant 0 : index
    %c0_54 = arith.constant 0 : index
    %37 = vector.load %arg2[%c0_53, %c0_54] : memref<72x16xbf16, #tpu.memory_space<vmem>>, vector<72x16xbf16>
    %cst = arith.constant dense<0.000000e+00> : vector<64x16xf32>
    %38 = tpu.matmul %36, %37, %cst {dimension_numbers = #tpu.dot_dimension_numbers<[1], [0], [0], [1], [0, 0, 1, 1], [], []>} : vector<64x72xbf16>, vector<72x16xbf16>, vector<64x16xf32> -> vector<64x16xf32>
    %c0_55 = arith.constant 0 : index
    %c0_56 = arith.constant 0 : index
    %39 = vector.load %arg3[%c0_55, %c0_56] : memref<1x16xf32, #tpu.memory_space<vmem>>, vector<1x16xf32>
    %40 = vector.broadcast %39 : vector<1x16xf32> to vector<64x16xf32>
    %41 = arith.addf %38, %40 : vector<64x16xf32>
    %cst_57 = arith.constant 0.000000e+00 : f32
    %42 = vector.broadcast %cst_57 : f32 to vector<64x16xf32>
    %43 = arith.maximumf %41, %42 : vector<64x16xf32>
    %44 = arith.truncf %43 : vector<64x16xf32> to vector<64x16xbf16>
    %45 = vector.shape_cast %44 : vector<64x16xbf16> to vector<8x8x16xbf16>
    %c0_58 = arith.constant 0 : index
    %c0_59 = arith.constant 0 : index
    %c0_60 = arith.constant 0 : index
    %46 = vector.load %arg6[%c0_58, %c0_59, %c0_60] : memref<8x8x16xbf16, #tpu.memory_space<vmem>>, vector<8x8x16xbf16>
    tpu.vector_store %arg6[%c0_58, %c0_59, %c0_60], %45 {strides = array<i32>} : memref<8x8x16xbf16, #tpu.memory_space<vmem>>, vector<8x8x16xbf16>,
    %c0_61 = arith.constant 0 : index
    %c0_62 = arith.constant 0 : index
    %c0_63 = arith.constant 0 : index
    %47 = vector.load %arg6[%c0_61, %c0_62, %c0_63] : memref<8x8x16xbf16, #tpu.memory_space<vmem>>, vector<8x1x16xbf16>
    %48 = vector.shape_cast %47 : vector<8x1x16xbf16> to vector<8x16xbf16>
    %c0_64 = arith.constant 0 : index
    %c0_65 = arith.constant 0 : index
    %c0_66 = arith.constant 0 : index
    %49 = vector.load %arg4[%c0_64, %c0_65, %c0_66] : memref<1x8x128xbf16, #tpu.memory_space<vmem>>, vector<1x8x16xbf16>
    %50 = vector.shape_cast %49 : vector<1x8x16xbf16> to vector<8x16xbf16>
    %51 = vector.shape_cast %48 : vector<8x16xbf16> to vector<1x8x16xbf16>
    tpu.vector_store %arg4[%c0_64, %c0_65, %c0_66], %51 {strides = array<i32>} : memref<1x8x128xbf16, #tpu.memory_space<vmem>>, vector<1x8x16xbf16>,
    %c0_67 = arith.constant 0 : index
    %c1_68 = arith.constant 1 : index
    %c0_69 = arith.constant 0 : index
    %52 = vector.load %arg6[%c0_67, %c1_68, %c0_69] : memref<8x8x16xbf16, #tpu.memory_space<vmem>>, vector<8x1x16xbf16>
    %53 = vector.shape_cast %52 : vector<8x1x16xbf16> to vector<8x16xbf16>
    %c0_70 = arith.constant 0 : index
    %c0_71 = arith.constant 0 : index
    %c16_72 = arith.constant 16 : index
    %54 = vector.load %arg4[%c0_70, %c0_71, %c16_72] : memref<1x8x128xbf16, #tpu.memory_space<vmem>>, vector<1x8x16xbf16>
    %55 = vector.shape_cast %54 : vector<1x8x16xbf16> to vector<8x16xbf16>
    %56 = vector.shape_cast %53 : vector<8x16xbf16> to vector<1x8x16xbf16>
    tpu.vector_store %arg4[%c0_70, %c0_71, %c16_72], %56 {strides = array<i32>} : memref<1x8x128xbf16, #tpu.memory_space<vmem>>, vector<1x8x16xbf16>,
    %c0_73 = arith.constant 0 : index
    %c2_74 = arith.constant 2 : index
    %c0_75 = arith.constant 0 : index
    %57 = vector.load %arg6[%c0_73, %c2_74, %c0_75] : memref<8x8x16xbf16, #tpu.memory_space<vmem>>, vector<8x1x16xbf16>
    %58 = vector.shape_cast %57 : vector<8x1x16xbf16> to vector<8x16xbf16>
    %c0_76 = arith.constant 0 : index
    %c0_77 = arith.constant 0 : index
    %c32_78 = arith.constant 32 : index
    %59 = vector.load %arg4[%c0_76, %c0_77, %c32_78] : memref<1x8x128xbf16, #tpu.memory_space<vmem>>, vector<1x8x16xbf16>
    %60 = vector.shape_cast %59 : vector<1x8x16xbf16> to vector<8x16xbf16>
    %61 = vector.shape_cast %58 : vector<8x16xbf16> to vector<1x8x16xbf16>
    tpu.vector_store %arg4[%c0_76, %c0_77, %c32_78], %61 {strides = array<i32>} : memref<1x8x128xbf16, #tpu.memory_space<vmem>>, vector<1x8x16xbf16>,
    %c0_79 = arith.constant 0 : index
    %c3_80 = arith.constant 3 : index
    %c0_81 = arith.constant 0 : index
    %62 = vector.load %arg6[%c0_79, %c3_80, %c0_81] : memref<8x8x16xbf16, #tpu.memory_space<vmem>>, vector<8x1x16xbf16>
    %63 = vector.shape_cast %62 : vector<8x1x16xbf16> to vector<8x16xbf16>
    %c0_82 = arith.constant 0 : index
    %c0_83 = arith.constant 0 : index
    %c48_84 = arith.constant 48 : index
    %64 = vector.load %arg4[%c0_82, %c0_83, %c48_84] : memref<1x8x128xbf16, #tpu.memory_space<vmem>>, vector<1x8x16xbf16>
    %65 = vector.shape_cast %64 : vector<1x8x16xbf16> to vector<8x16xbf16>
    %66 = vector.shape_cast %63 : vector<8x16xbf16> to vector<1x8x16xbf16>
    tpu.vector_store %arg4[%c0_82, %c0_83, %c48_84], %66 {strides = array<i32>} : memref<1x8x128xbf16, #tpu.memory_space<vmem>>, vector<1x8x16xbf16>,
    %c0_85 = arith.constant 0 : index
    %c4 = arith.constant 4 : index
    %c0_86 = arith.constant 0 : index
    %67 = vector.load %arg6[%c0_85, %c4, %c0_86] : memref<8x8x16xbf16, #tpu.memory_space<vmem>>, vector<8x1x16xbf16>
    %68 = vector.shape_cast %67 : vector<8x1x16xbf16> to vector<8x16xbf16>
    %c0_87 = arith.constant 0 : index
    %c0_88 = arith.constant 0 : index
    %c64_89 = arith.constant 64 : index
    %69 = vector.load %arg4[%c0_87, %c0_88, %c64_89] : memref<1x8x128xbf16, #tpu.memory_space<vmem>>, vector<1x8x16xbf16>
    %70 = vector.shape_cast %69 : vector<1x8x16xbf16> to vector<8x16xbf16>
    %71 = vector.shape_cast %68 : vector<8x16xbf16> to vector<1x8x16xbf16>
    tpu.vector_store %arg4[%c0_87, %c0_88, %c64_89], %71 {strides = array<i32>} : memref<1x8x128xbf16, #tpu.memory_space<vmem>>, vector<1x8x16xbf16>,
    %c0_90 = arith.constant 0 : index
    %c5 = arith.constant 5 : index
    %c0_91 = arith.constant 0 : index
    %72 = vector.load %arg6[%c0_90, %c5, %c0_91] : memref<8x8x16xbf16, #tpu.memory_space<vmem>>, vector<8x1x16xbf16>
    %73 = vector.shape_cast %72 : vector<8x1x16xbf16> to vector<8x16xbf16>
    %c0_92 = arith.constant 0 : index
    %c0_93 = arith.constant 0 : index
    %c80 = arith.constant 80 : index
    %74 = vector.load %arg4[%c0_92, %c0_93, %c80] : memref<1x8x128xbf16, #tpu.memory_space<vmem>>, vector<1x8x16xbf16>
    %75 = vector.shape_cast %74 : vector<1x8x16xbf16> to vector<8x16xbf16>
    %76 = vector.shape_cast %73 : vector<8x16xbf16> to vector<1x8x16xbf16>
    tpu.vector_store %arg4[%c0_92, %c0_93, %c80], %76 {strides = array<i32>} : memref<1x8x128xbf16, #tpu.memory_space<vmem>>, vector<1x8x16xbf16>,
    %c0_94 = arith.constant 0 : index
    %c6 = arith.constant 6 : index
    %c0_95 = arith.constant 0 : index
    %77 = vector.load %arg6[%c0_94, %c6, %c0_95] : memref<8x8x16xbf16, #tpu.memory_space<vmem>>, vector<8x1x16xbf16>
    %78 = vector.shape_cast %77 : vector<8x1x16xbf16> to vector<8x16xbf16>
    %c0_96 = arith.constant 0 : index
    %c0_97 = arith.constant 0 : index
    %c96 = arith.constant 96 : index
    %79 = vector.load %arg4[%c0_96, %c0_97, %c96] : memref<1x8x128xbf16, #tpu.memory_space<vmem>>, vector<1x8x16xbf16>
    %80 = vector.shape_cast %79 : vector<1x8x16xbf16> to vector<8x16xbf16>
    %81 = vector.shape_cast %78 : vector<8x16xbf16> to vector<1x8x16xbf16>
    tpu.vector_store %arg4[%c0_96, %c0_97, %c96], %81 {strides = array<i32>} : memref<1x8x128xbf16, #tpu.memory_space<vmem>>, vector<1x8x16xbf16>,
    %c0_98 = arith.constant 0 : index
    %c7 = arith.constant 7 : index
    %c0_99 = arith.constant 0 : index
    %82 = vector.load %arg6[%c0_98, %c7, %c0_99] : memref<8x8x16xbf16, #tpu.memory_space<vmem>>, vector<8x1x16xbf16>
    %83 = vector.shape_cast %82 : vector<8x1x16xbf16> to vector<8x16xbf16>
    %c0_100 = arith.constant 0 : index
    %c0_101 = arith.constant 0 : index
    %c112 = arith.constant 112 : index
    %84 = vector.load %arg4[%c0_100, %c0_101, %c112] : memref<1x8x128xbf16, #tpu.memory_space<vmem>>, vector<1x8x16xbf16>
    %85 = vector.shape_cast %84 : vector<1x8x16xbf16> to vector<8x16xbf16>
    %86 = vector.shape_cast %83 : vector<8x16xbf16> to vector<1x8x16xbf16>
    tpu.vector_store %arg4[%c0_100, %c0_101, %c112], %86 {strides = array<i32>} : memref<1x8x128xbf16, #tpu.memory_space<vmem>>, vector<1x8x16xbf16>,
    return
  }
  func.func @transform_0(%arg0: i32) -> (i32, i32, i32, i32, i32) {
    %c0_i32 = arith.constant 0 : i32
    %c0_i32_0 = arith.constant 0 : i32
    %c0_i32_1 = arith.constant 0 : i32
    %c0_i32_2 = arith.constant 0 : i32
    %c0_i32_3 = arith.constant 0 : i32
    return %arg0, %c0_i32, %c0_i32_0, %c0_i32_1, %c0_i32_2 : i32, i32, i32, i32, i32
  }
  func.func @transform_1(%arg0: i32) -> (i32, i32) {
    %c0_i32 = arith.constant 0 : i32
    %c0_i32_0 = arith.constant 0 : i32
    %c0_i32_1 = arith.constant 0 : i32
    return %c0_i32, %c0_i32_0 : i32, i32
  }
  func.func @transform_2(%arg0: i32) -> (i32, i32) {
    %c0_i32 = arith.constant 0 : i32
    %c0_i32_0 = arith.constant 0 : i32
    %c0_i32_1 = arith.constant 0 : i32
    return %c0_i32, %c0_i32_0 : i32, i32
  }
  func.func @transform_3(%arg0: i32) -> (i32, i32, i32) {
    %c0_i32 = arith.constant 0 : i32
    %c0_i32_0 = arith.constant 0 : i32
    %c0_i32_1 = arith.constant 0 : i32
    return %arg0, %c0_i32, %c0_i32_0 : i32, i32, i32
  }
}

</mosaic_0001>

<llo_original>
// kernel: tpu_custom_call.1
$region0: #{tpu_custom_call.1}
  #allocation0 [shape = 'u32[]', space=smem, size = 0x4, offset = 0x4, fixed_abs, tag = 'smem constant byte address 0x4 - core index']
  #allocation1 [shape = 'u32[144,128]{1,0:T(1,128)}', space=vmem, size = 0x12000, scoped, tag = 'internal scratch']
  #allocation2 [shape = 'bf16[64,72]{1,0:T(8,128)(2,1)}', space=vmem, size = 0x4000, scoped, tag = 'scratch operand']
  #allocation3 [shape = 'bf16[8,8,16]{2,1,0:T(8,128)(2,1)}', space=vmem, size = 0x4000, scoped, tag = 'scratch operand']
  %s0 = inlined_call_operand.vmem [shape: bf16[2,9,4,9,8], index: 0, kind: input, shape index: {}]
  %s1 = inlined_call_operand.vmem [shape: bf16[72,16], index: 1, kind: input, shape index: {}]
  %s2 = inlined_call_operand.vmem [shape: f32[1,16], index: 2, kind: input, shape index: {}]
  %s3 = inlined_call_operand.hbm [shape: bf16[2,8,128], index: 3, kind: output, shape index: {}]
  %s4 = sld [smem:[#allocation0]]
  $region45: #{tpu_custom_call.1} parent=0
    _
  %s6 = ssub.s32 1, %s4
  %s7 = scalar_select 0, %s6, %s4
  $region1: #{tpu_custom_call.1} parent=0
    #allocation4 [shape = 'u8[4096]{0}', space=vmem, size = 0x1000, scoped, tag = 'output window, operand 0']
    #allocation5 [shape = 's32[2]{0}', space=sflag, size = 0x8, scoped, tag = 'scoped memory for tpu_custom_call.1']
    %8 = vsyncpa [#allocation5], 0
    %s9 = scalar_lea.sflag [#allocation5], 1
    %10 = vsyncpa %s9, 0
    loop: start=0, step=1, limit=4
    $region2: #{tpu_custom_call.1} parent=1 // loop_pre_header
      _
    $region3: #{tpu_custom_call.1} parent=1 // loop_header
      %s12 = sphi 0, %s16
      %p13 = scmp.ge.s32.totalorder %s12, 4
      %s22 = sphi 0, %s24
      %s25 = sphi 0, %s22
      %s26 = sphi 0, %s25
      %s42 = sphi 0, %s26
      %s46 = sphi 0, %s46
      %s48 = sphi 0, %s46
      %s49 = sphi 0, %s48
      %s63 = sphi 0, %s49
      %s67 = sphi 0, %s67
      %s69 = sphi 0, %s67
      %s70 = sphi 0, %s69
      %s84 = sphi 0, %s70
      %s90 = sphi 0, %s92
      %s93 = sphi 0, %s90
      %s94 = sphi 0, %s93
      %s110 = sphi 0, %s94
    $region4: #{tpu_custom_call.1} parent=1 // loop_header_branch
      %15 = sbr.rel (%p13) target = $region8
    $region5: #{tpu_custom_call.1} parent=1 // loop_body
      %s17 = ssub.s32 %s12, 1
      %s18 = ssub.s32 %s12, 2
      %s19 = sadd.s32 %s12, 1
      %s20 = ssub.s32 %s12, %s19
      %p21 = scmp.eq.s32.totalorder %s20, 0
      %s23 = sadd.s32 %s22, 1
      %s24 = scalar_select %p21, %s22, %s23
      %p27 = pneg %p21
      %p28 = scmp.eq.s32.totalorder %s12, 1
      %p29 = por %p27, %p28
      %p30 = scmp.ne.s32.totalorder %s22, %s25
      %p31 = scmp.eq.s32.totalorder %s12, 0
      %p32 = por %p30, %p31
      %p33 = scmp.ne.s32.totalorder %s22, %s25
      %p34 = scmp.eq.s32.totalorder %s17, 1
      %p35 = por %p33, %p34
      %p36 = scmp.ne.s32.totalorder %s25, %s26
      %p37 = scmp.eq.s32.totalorder %s17, 0
      %p38 = por %p36, %p37
      %p39 = scmp.ne.s32.totalorder %s25, %s26
      %p40 = scmp.eq.s32.totalorder %s18, 1
      %p41 = por %p39, %p40
      %p43 = scmp.ne.s32.totalorder %s26, %s42
      %p44 = scmp.eq.s32.totalorder %s18, 0
      %p45 = por %p43, %p44
      %s47 = sadd.s32 %s46, 1
      %p50 = scmp.eq.s32.totalorder %s12, 1
      %p51 = scmp.ne.s32.totalorder %s46, %s48
      %p52 = scmp.eq.s32.totalorder %s12, 0
      %p53 = por %p51, %p52
      %p54 = scmp.ne.s32.totalorder %s46, %s48
      %p55 = scmp.eq.s32.totalorder %s17, 1
      %p56 = por %p54, %p55
      %p57 = scmp.ne.s32.totalorder %s48, %s49
      %p58 = scmp.eq.s32.totalorder %s17, 0
      %p59 = por %p57, %p58
      %p60 = scmp.ne.s32.totalorder %s48, %s49
      %p61 = scmp.eq.s32.totalorder %s18, 1
      %p62 = por %p60, %p61
      %p64 = scmp.ne.s32.totalorder %s49, %s63
      %p65 = scmp.eq.s32.totalorder %s18, 0
      %p66 = por %p64, %p65
      %s68 = sadd.s32 %s67, 1
      %p71 = scmp.eq.s32.totalorder %s12, 1
      %p72 = scmp.ne.s32.totalorder %s67, %s69
      %p73 = scmp.eq.s32.totalorder %s12, 0
      %p74 = por %p72, %p73
      %p75 = scmp.ne.s32.totalorder %s67, %s69
      %p76 = scmp.eq.s32.totalorder %s17, 1
      %p77 = por %p75, %p76
      %p78 = scmp.ne.s32.totalorder %s69, %s70
      %p79 = scmp.eq.s32.totalorder %s17, 0
      %p80 = por %p78, %p79
      %p81 = scmp.ne.s32.totalorder %s69, %s70
      %p82 = scmp.eq.s32.totalorder %s18, 1
      %p83 = por %p81, %p82
      %p85 = scmp.ne.s32.totalorder %s70, %s84
      %p86 = scmp.eq.s32.totalorder %s18, 0
      %p87 = por %p85, %p86
      %s88 = ssub.s32 %s12, %s19
      %p89 = scmp.eq.s32.totalorder %s88, 0
      %s91 = sadd.s32 %s90, 1
      %s92 = scalar_select %p89, %s90, %s91
      %p95 = pneg %p89
      %p96 = scmp.eq.s32.totalorder %s12, 1
      %p97 = por %p95, %p96
      %p98 = scmp.ne.s32.totalorder %s90, %s93
      %p99 = scmp.eq.s32.totalorder %s12, 0
      %p100 = por %p98, %p99
      %p101 = scmp.ne.s32.totalorder %s90, %s93
      %p102 = scmp.eq.s32.totalorder %s17, 1
      %p103 = por %p101, %p102
      %p104 = scmp.ne.s32.totalorder %s93, %s94
      %p105 = scmp.eq.s32.totalorder %s17, 0
      %p106 = por %p104, %p105
      %p107 = scmp.ne.s32.totalorder %s93, %s94
      %p108 = scmp.eq.s32.totalorder %s18, 1
      %p109 = por %p107, %p108
      %p111 = scmp.ne.s32.totalorder %s94, %s110
      %p112 = scmp.eq.s32.totalorder %s18, 0
      %p113 = por %p111, %p112
      %p114 = scmp.le.s32.totalorder 1, %s12
      %p115 = scmp.lt.s32.totalorder %s12, 3
      %p116 = pnand %p114, %p115
      %p117 = pneg %p116
      // Predicated region
      $region9: #{tpu_custom_call.1} parent=5 // pred_check
        _
      $region10: #{tpu_custom_call.1} parent=5 // pred_check_branch
        %119 = sbr.rel (%p116) target = $region12
      $region11: #{tpu_custom_call.1} parent=5 // pred_region
        %s120 = ssub.s32 %s12, 1
        // Predicated region
        $region13: #{tpu_custom_call.1} parent=11 // pred_check
          %p121 = pneg %p59
        $region14: #{tpu_custom_call.1} parent=11 // pred_check_branch
          %123 = sbr.rel (%p121) target = $region16
        $region15: #{tpu_custom_call.1} parent=11 // pred_region
          _
        $region16: #{tpu_custom_call.1} parent=11 // pred_fallthru
          _
        // Predicated region
        $region17: #{tpu_custom_call.1} parent=11 // pred_check
          %p124 = pneg %p80
        $region18: #{tpu_custom_call.1} parent=11 // pred_check_branch
          %126 = sbr.rel (%p124) target = $region20
        $region19: #{tpu_custom_call.1} parent=11 // pred_region
          _
        $region20: #{tpu_custom_call.1} parent=11 // pred_fallthru
          _
      $region12: #{tpu_custom_call.1} parent=5 // pred_fallthru
        _
      %p127 = scmp.lt.s32.totalorder %s12, 2
      // Predicated region
      $region21: #{tpu_custom_call.1} parent=5 // pred_check
        %p128 = pneg %p127
      $region22: #{tpu_custom_call.1} parent=5 // pred_check_branch
        %130 = sbr.rel (%p128) target = $region24
      $region23: #{tpu_custom_call.1} parent=5 // pred_region
        // Predicated region
        $region25: #{tpu_custom_call.1} parent=23 // pred_check
          %p131 = pneg %p32
        $region26: #{tpu_custom_call.1} parent=23 // pred_check_branch
          %133 = sbr.rel (%p131) target = $region28
        $region27: #{tpu_custom_call.1} parent=23 // pred_region
          %p134 = scmp.lt.s32.totalorder %s12, 1
          %s135 = scalar_select %p134, %s12, 1
          %s136 = smul.addr %s135, 72
          %s137 = smul.addr %s136, 4
          %s138 = scalar_lea.vmem %s0, %s137
        $region28: #{tpu_custom_call.1} parent=23 // pred_fallthru
          _
      $region24: #{tpu_custom_call.1} parent=5 // pred_fallthru
        _
      %p139 = scmp.le.s32.totalorder 1, %s12
      %p140 = scmp.lt.s32.totalorder %s12, 3
      %p141 = pnand %p139, %p140
      %p142 = pneg %p141
      // Predicated region
      $region29: #{tpu_custom_call.1} parent=5 // pred_check
        _
      $region30: #{tpu_custom_call.1} parent=5 // pred_check_branch
        %144 = sbr.rel (%p141) target = $region32
      $region31: #{tpu_custom_call.1} parent=5 // pred_region
        %s145 = ssub.s32 %s12, 1
        %p146 = scmp.lt.s32.totalorder %s17, 1
        %s147 = scalar_select %p146, %s17, 1
        %s148 = smul.addr %s147, 72
        %s149 = smul.addr %s148, 4
        %s150 = scalar_lea.vmem %s0, %s149
        %p151 = pneg %p38
        %p152 = pneg %p35
        %p153 = pneg %p59
        %p154 = pneg %p56
        %p155 = pneg %p80
        %p156 = pneg %p77
        %p157 = pneg %p106
        %p158 = pneg %p103
        %s159 = sand.u32 %s93, 1
        %s160 = scalar_lea.sflag [#allocation5], %s159
        %s161 = sand.u32 %s93, 1
        %s162 = smul.addr %s161, 4
        %s163 = scalar_lea.vmem [#allocation4], %s162
        %p164 = scmp.lt.s32.totalorder %s17, 1
        %s165 = scalar_select %p164, %s17, 1
        %s166 = smul.addr %s165, 72
        %s167 = smul.addr %s166, 4
        %s168 = scalar_lea.vmem %s0, %s167
        %v170 = vld [vmem:[%s168] sm:$0xf]
        %v171 = vld [vmem:[%s168 + $0x20] sm:$0xf]
        %v172 = vld [vmem:[%s168 + $0x40] sm:$0xf]
        %v173 = vld [vmem:[%s168 + $0x60] sm:$0xf]
        %v174 = vld [vmem:[%s168 + $0x80] sm:$0xf]
        %v175 = vld [vmem:[%s168 + $0xa0] sm:$0xf]
        %v176 = vld [vmem:[%s168 + $0xc0] sm:$0xf]
        %v177 = vld [vmem:[%s168 + $0xe0] sm:$0xf]
        %vm178 = vcmask 60416
        %179 = vst.msk [vmem:[#allocation2] sm:$0xf] %vm178, %v170
        %180 = vst.msk [vmem:[#allocation2 + $0x4] sm:$0xf] %vm178, %v171
        %181 = vst.msk [vmem:[#allocation2 + $0x8] sm:$0xf] %vm178, %v172
        %182 = vst.msk [vmem:[#allocation2 + $0xc] sm:$0xf] %vm178, %v173
        %183 = vst.msk [vmem:[#allocation2 + $0x10] sm:$0xf] %vm178, %v174
        %184 = vst.msk [vmem:[#allocation2 + $0x14] sm:$0xf] %vm178, %v175
        %185 = vst.msk [vmem:[#allocation2 + $0x18] sm:$0xf] %vm178, %v176
        %186 = vst.msk [vmem:[#allocation2 + $0x1c] sm:$0xf] %vm178, %v177
        %s187 = scalar_lea.vmem %s168, 8
        %v188 = vld [vmem:[%s187] sm:$0xf]
        %v189 = vld [vmem:[%s187 + $0x20] sm:$0xf]
        %v190 = vld [vmem:[%s187 + $0x40] sm:$0xf]
        %v191 = vld [vmem:[%s187 + $0x60] sm:$0xf]
        %v192 = vld [vmem:[%s187 + $0x80] sm:$0xf]
        %v193 = vld [vmem:[%s187 + $0xa0] sm:$0xf]
        %v194 = vld [vmem:[%s187 + $0xc0] sm:$0xf]
        %v195 = vld [vmem:[%s187 + $0xe0] sm:$0xf]
        %204 = vrot.lane.b32.xlu0 %v188, 8
        %v205 = vpop.permute.xlu0 %204
        %206 = vrot.lane.b32.xlu0 %v189, 8
        %v207 = vpop.permute.xlu0 %206
        %208 = vrot.lane.b32.xlu0 %v190, 8
        %v209 = vpop.permute.xlu0 %208
        %210 = vrot.lane.b32.xlu0 %v191, 8
        %v211 = vpop.permute.xlu0 %210
        %212 = vrot.lane.b32.xlu0 %v192, 8
        %v213 = vpop.permute.xlu0 %212
        %214 = vrot.lane.b32.xlu0 %v193, 8
        %v215 = vpop.permute.xlu0 %214
        %216 = vrot.lane.b32.xlu0 %v194, 8
        %v217 = vpop.permute.xlu0 %216
        %218 = vrot.lane.b32.xlu0 %v195, 8
        %v219 = vpop.permute.xlu0 %218
        %vm228 = vcmask 126016
        %229 = vst.msk [vmem:[#allocation2] sm:$0xf] %vm228, %v205
        %230 = vst.msk [vmem:[#allocation2 + $0x4] sm:$0xf] %vm228, %v207
        %231 = vst.msk [vmem:[#allocation2 + $0x8] sm:$0xf] %vm228, %v209
        %232 = vst.msk [vmem:[#allocation2 + $0xc] sm:$0xf] %vm228, %v211
        %233 = vst.msk [vmem:[#allocation2 + $0x10] sm:$0xf] %vm228, %v213
        %234 = vst.msk [vmem:[#allocation2 + $0x14] sm:$0xf] %vm228, %v215
        %235 = vst.msk [vmem:[#allocation2 + $0x18] sm:$0xf] %vm228, %v217
        %236 = vst.msk [vmem:[#allocation2 + $0x1c] sm:$0xf] %vm228, %v219
        %v237 = vld [vmem:[%s168] sm:$0xf]
        %v238 = vld [vmem:[%s168 + $0x4] sm:$0x1]
        %v239 = vld [vmem:[%s168 + $0x20] sm:$0xf]
        %v240 = vld [vmem:[%s168 + $0x24] sm:$0x1]
        %v241 = vld [vmem:[%s168 + $0x40] sm:$0xf]
        %v242 = vld [vmem:[%s168 + $0x44] sm:$0x1]
        %v243 = vld [vmem:[%s168 + $0x60] sm:$0xf]
        %v244 = vld [vmem:[%s168 + $0x64] sm:$0x1]
        %v245 = vld [vmem:[%s168 + $0x80] sm:$0xf]
        %v246 = vld [vmem:[%s168 + $0x84] sm:$0x1]
        %v247 = vld [vmem:[%s168 + $0xa0] sm:$0xf]
        %v248 = vld [vmem:[%s168 + $0xa4] sm:$0x1]
        %v249 = vld [vmem:[%s168 + $0xc0] sm:$0xf]
        %v250 = vld [vmem:[%s168 + $0xc4] sm:$0x1]
        %v251 = vld [vmem:[%s168 + $0xe0] sm:$0xf]
        %v252 = vld [vmem:[%s168 + $0xe4] sm:$0x1]
        %vm253 = vsmask.f32 3328
        %vm254 = vsmask.f32 7440
        %vm255 = vmor %vm253, %vm254
        %v257 = vshrl.u32 %v237, 16
        %v259 = vrot.slane %v257, 4
        %v260 = vshll.u32 %v237, 16
        %v262 = vrot.slane %v260, 5
        %v263 = vor.u32 %v259, %v262
        %v264 = vrot.slane %v263, 4
        %v266 = vshll.u32 %v238, 16
        %v268 = vrot.slane %v266, 5
        %v269 = vsel %vm255, %v264, %v268
        %v271 = vshrl.u32 %v239, 16
        %v273 = vrot.slane %v271, 4
        %v274 = vshll.u32 %v239, 16
        %v276 = vrot.slane %v274, 5
        %v277 = vor.u32 %v273, %v276
        %v278 = vrot.slane %v277, 4
        %v280 = vshll.u32 %v240, 16
        %v282 = vrot.slane %v280, 5
        %v283 = vsel %vm255, %v278, %v282
        %v285 = vshrl.u32 %v241, 16
        %v287 = vrot.slane %v285, 4
        %v288 = vshll.u32 %v241, 16
        %v290 = vrot.slane %v288, 5
        %v291 = vor.u32 %v287, %v290
        %v292 = vrot.slane %v291, 4
        %v294 = vshll.u32 %v242, 16
        %v296 = vrot.slane %v294, 5
        %v297 = vsel %vm255, %v292, %v296
        %v299 = vshrl.u32 %v243, 16
        %v301 = vrot.slane %v299, 4
        %v302 = vshll.u32 %v243, 16
        %v304 = vrot.slane %v302, 5
        %v305 = vor.u32 %v301, %v304
        %v306 = vrot.slane %v305, 4
        %v308 = vshll.u32 %v244, 16
        %v310 = vrot.slane %v308, 5
        %v311 = vsel %vm255, %v306, %v310
        %v313 = vshrl.u32 %v245, 16
        %v315 = vrot.slane %v313, 4
        %v316 = vshll.u32 %v245, 16
        %v318 = vrot.slane %v316, 5
        %v319 = vor.u32 %v315, %v318
        %v320 = vrot.slane %v319, 4
        %v322 = vshll.u32 %v246, 16
        %v324 = vrot.slane %v322, 5
        %v325 = vsel %vm255, %v320, %v324
        %v327 = vshrl.u32 %v247, 16
        %v329 = vrot.slane %v327, 4
        %v330 = vshll.u32 %v247, 16
        %v332 = vrot.slane %v330, 5
        %v333 = vor.u32 %v329, %v332
        %v334 = vrot.slane %v333, 4
        %v336 = vshll.u32 %v248, 16
        %v338 = vrot.slane %v336, 5
        %v339 = vsel %vm255, %v334, %v338
        %v341 = vshrl.u32 %v249, 16
        %v343 = vrot.slane %v341, 4
        %v344 = vshll.u32 %v249, 16
        %v346 = vrot.slane %v344, 5
        %v347 = vor.u32 %v343, %v346
        %v348 = vrot.slane %v347, 4
        %v350 = vshll.u32 %v250, 16
        %v352 = vrot.slane %v350, 5
        %v353 = vsel %vm255, %v348, %v352
        %v355 = vshrl.u32 %v251, 16
        %v357 = vrot.slane %v355, 4
        %v358 = vshll.u32 %v251, 16
        %v360 = vrot.slane %v358, 5
        %v361 = vor.u32 %v357, %v360
        %v362 = vrot.slane %v361, 4
        %v364 = vshll.u32 %v252, 16
        %v366 = vrot.slane %v364, 5
        %v367 = vsel %vm255, %v362, %v366
        %368 = vrot.lane.b32.xlu0 %v269, 16
        %v369 = vpop.permute.xlu0 %368
        %370 = vrot.lane.b32.xlu0 %v283, 16
        %v371 = vpop.permute.xlu0 %370
        %372 = vrot.lane.b32.xlu0 %v297, 16
        %v373 = vpop.permute.xlu0 %372
        %374 = vrot.lane.b32.xlu0 %v311, 16
        %v375 = vpop.permute.xlu0 %374
        %376 = vrot.lane.b32.xlu0 %v325, 16
        %v377 = vpop.permute.xlu0 %376
        %378 = vrot.lane.b32.xlu0 %v339, 16
        %v379 = vpop.permute.xlu0 %378
        %380 = vrot.lane.b32.xlu0 %v353, 16
        %v381 = vpop.permute.xlu0 %380
        %382 = vrot.lane.b32.xlu0 %v367, 16
        %v383 = vpop.permute.xlu0 %382
        %vm392 = vcmask 191616
        %393 = vst.msk [vmem:[#allocation2] sm:$0xf] %vm392, %v369
        %394 = vst.msk [vmem:[#allocation2 + $0x4] sm:$0xf] %vm392, %v371
        %395 = vst.msk [vmem:[#allocation2 + $0x8] sm:$0xf] %vm392, %v373
        %396 = vst.msk [vmem:[#allocation2 + $0xc] sm:$0xf] %vm392, %v375
        %397 = vst.msk [vmem:[#allocation2 + $0x10] sm:$0xf] %vm392, %v377
        %398 = vst.msk [vmem:[#allocation2 + $0x14] sm:$0xf] %vm392, %v379
        %399 = vst.msk [vmem:[#allocation2 + $0x18] sm:$0xf] %vm392, %v381
        %400 = vst.msk [vmem:[#allocation2 + $0x1c] sm:$0xf] %vm392, %v383
        %s401 = scalar_lea.vmem %s168, 16
        %v402 = vld [vmem:[%s401] sm:$0xf]
        %v403 = vld [vmem:[%s401 + $0x20] sm:$0xf]
        %v404 = vld [vmem:[%s401 + $0x40] sm:$0xf]
        %v405 = vld [vmem:[%s401 + $0x60] sm:$0xf]
        %v406 = vld [vmem:[%s401 + $0x80] sm:$0xf]
        %v407 = vld [vmem:[%s401 + $0xa0] sm:$0xf]
        %v408 = vld [vmem:[%s401 + $0xc0] sm:$0xf]
        %v409 = vld [vmem:[%s401 + $0xe0] sm:$0xf]
        %418 = vrot.lane.b32.xlu0 %v402, 24
        %v419 = vpop.permute.xlu0 %418
        %420 = vrot.lane.b32.xlu0 %v403, 24
        %v421 = vpop.permute.xlu0 %420
        %422 = vrot.lane.b32.xlu0 %v404, 24
        %v423 = vpop.permute.xlu0 %422
        %424 = vrot.lane.b32.xlu0 %v405, 24
        %v425 = vpop.permute.xlu0 %424
        %426 = vrot.lane.b32.xlu0 %v406, 24
        %v427 = vpop.permute.xlu0 %426
        %428 = vrot.lane.b32.xlu0 %v407, 24
        %v429 = vpop.permute.xlu0 %428
        %430 = vrot.lane.b32.xlu0 %v408, 24
        %v431 = vpop.permute.xlu0 %430
        %432 = vrot.lane.b32.xlu0 %v409, 24
        %v433 = vpop.permute.xlu0 %432
        %vm442 = vcmask 257216
        %443 = vst.msk [vmem:[#allocation2] sm:$0xf] %vm442, %v419
        %444 = vst.msk [vmem:[#allocation2 + $0x4] sm:$0xf] %vm442, %v421
        %445 = vst.msk [vmem:[#allocation2 + $0x8] sm:$0xf] %vm442, %v423
        %446 = vst.msk [vmem:[#allocation2 + $0xc] sm:$0xf] %vm442, %v425
        %447 = vst.msk [vmem:[#allocation2 + $0x10] sm:$0xf] %vm442, %v427
        %448 = vst.msk [vmem:[#allocation2 + $0x14] sm:$0xf] %vm442, %v429
        %449 = vst.msk [vmem:[#allocation2 + $0x18] sm:$0xf] %vm442, %v431
        %450 = vst.msk [vmem:[#allocation2 + $0x1c] sm:$0xf] %vm442, %v433
        %s451 = scalar_lea.vmem %s168, 24
        %v452 = vld [vmem:[%s451] sm:$0xf]
        %v453 = vld [vmem:[%s451 + $0x20] sm:$0xf]
        %v454 = vld [vmem:[%s451 + $0x40] sm:$0xf]
        %v455 = vld [vmem:[%s451 + $0x60] sm:$0xf]
        %v456 = vld [vmem:[%s451 + $0x80] sm:$0xf]
        %v457 = vld [vmem:[%s451 + $0xa0] sm:$0xf]
        %v458 = vld [vmem:[%s451 + $0xc0] sm:$0xf]
        %v459 = vld [vmem:[%s451 + $0xe0] sm:$0xf]
        %468 = vrot.lane.b32.xlu0 %v452, 32
        %v469 = vpop.permute.xlu0 %468
        %470 = vrot.lane.b32.xlu0 %v453, 32
        %v471 = vpop.permute.xlu0 %470
        %472 = vrot.lane.b32.xlu0 %v454, 32
        %v473 = vpop.permute.xlu0 %472
        %474 = vrot.lane.b32.xlu0 %v455, 32
        %v475 = vpop.permute.xlu0 %474
        %476 = vrot.lane.b32.xlu0 %v456, 32
        %v477 = vpop.permute.xlu0 %476
        %478 = vrot.lane.b32.xlu0 %v457, 32
        %v479 = vpop.permute.xlu0 %478
        %480 = vrot.lane.b32.xlu0 %v458, 32
        %v481 = vpop.permute.xlu0 %480
        %482 = vrot.lane.b32.xlu0 %v459, 32
        %v483 = vpop.permute.xlu0 %482
        %vm492 = vcmask 322816
        %493 = vst.msk [vmem:[#allocation2] sm:$0xf] %vm492, %v469
        %494 = vst.msk [vmem:[#allocation2 + $0x4] sm:$0xf] %vm492, %v471
        %495 = vst.msk [vmem:[#allocation2 + $0x8] sm:$0xf] %vm492, %v473
        %496 = vst.msk [vmem:[#allocation2 + $0xc] sm:$0xf] %vm492, %v475
        %497 = vst.msk [vmem:[#allocation2 + $0x10] sm:$0xf] %vm492, %v477
        %498 = vst.msk [vmem:[#allocation2 + $0x14] sm:$0xf] %vm492, %v479
        %499 = vst.msk [vmem:[#allocation2 + $0x18] sm:$0xf] %vm492, %v481
        %500 = vst.msk [vmem:[#allocation2 + $0x1c] sm:$0xf] %vm492, %v483
        %v501 = vld [vmem:[%s401] sm:$0xf]
        %v502 = vld [vmem:[%s401 + $0x4] sm:$0x1]
        %v503 = vld [vmem:[%s401 + $0x20] sm:$0xf]
        %v504 = vld [vmem:[%s401 + $0x24] sm:$0x1]
        %v505 = vld [vmem:[%s401 + $0x40] sm:$0xf]
        %v506 = vld [vmem:[%s401 + $0x44] sm:$0x1]
        %v507 = vld [vmem:[%s401 + $0x60] sm:$0xf]
        %v508 = vld [vmem:[%s401 + $0x64] sm:$0x1]
        %v509 = vld [vmem:[%s401 + $0x80] sm:$0xf]
        %v510 = vld [vmem:[%s401 + $0x84] sm:$0x1]
        %v511 = vld [vmem:[%s401 + $0xa0] sm:$0xf]
        %v512 = vld [vmem:[%s401 + $0xa4] sm:$0x1]
        %v513 = vld [vmem:[%s401 + $0xc0] sm:$0xf]
        %v514 = vld [vmem:[%s401 + $0xc4] sm:$0x1]
        %v515 = vld [vmem:[%s401 + $0xe0] sm:$0xf]
        %v516 = vld [vmem:[%s401 + $0xe4] sm:$0x1]
        %v518 = vshrl.u32 %v501, 16
        %v520 = vrot.slane %v518, 4
        %v521 = vshll.u32 %v501, 16
        %v523 = vrot.slane %v521, 5
        %v524 = vor.u32 %v520, %v523
        %v525 = vrot.slane %v524, 4
        %v527 = vshll.u32 %v502, 16
        %v529 = vrot.slane %v527, 5
        %v530 = vsel %vm255, %v525, %v529
        %v532 = vshrl.u32 %v503, 16
        %v534 = vrot.slane %v532, 4
        %v535 = vshll.u32 %v503, 16
        %v537 = vrot.slane %v535, 5
        %v538 = vor.u32 %v534, %v537
        %v539 = vrot.slane %v538, 4
        %v541 = vshll.u32 %v504, 16
        %v543 = vrot.slane %v541, 5
        %v544 = vsel %vm255, %v539, %v543
        %v546 = vshrl.u32 %v505, 16
        %v548 = vrot.slane %v546, 4
        %v549 = vshll.u32 %v505, 16
        %v551 = vrot.slane %v549, 5
        %v552 = vor.u32 %v548, %v551
        %v553 = vrot.slane %v552, 4
        %v555 = vshll.u32 %v506, 16
        %v557 = vrot.slane %v555, 5
        %v558 = vsel %vm255, %v553, %v557
        %v560 = vshrl.u32 %v507, 16
        %v562 = vrot.slane %v560, 4
        %v563 = vshll.u32 %v507, 16
        %v565 = vrot.slane %v563, 5
        %v566 = vor.u32 %v562, %v565
        %v567 = vrot.slane %v566, 4
        %v569 = vshll.u32 %v508, 16
        %v571 = vrot.slane %v569, 5
        %v572 = vsel %vm255, %v567, %v571
        %v574 = vshrl.u32 %v509, 16
        %v576 = vrot.slane %v574, 4
        %v577 = vshll.u32 %v509, 16
        %v579 = vrot.slane %v577, 5
        %v580 = vor.u32 %v576, %v579
        %v581 = vrot.slane %v580, 4
        %v583 = vshll.u32 %v510, 16
        %v585 = vrot.slane %v583, 5
        %v586 = vsel %vm255, %v581, %v585
        %v588 = vshrl.u32 %v511, 16
        %v590 = vrot.slane %v588, 4
        %v591 = vshll.u32 %v511, 16
        %v593 = vrot.slane %v591, 5
        %v594 = vor.u32 %v590, %v593
        %v595 = vrot.slane %v594, 4
        %v597 = vshll.u32 %v512, 16
        %v599 = vrot.slane %v597, 5
        %v600 = vsel %vm255, %v595, %v599
        %v602 = vshrl.u32 %v513, 16
        %v604 = vrot.slane %v602, 4
        %v605 = vshll.u32 %v513, 16
        %v607 = vrot.slane %v605, 5
        %v608 = vor.u32 %v604, %v607
        %v609 = vrot.slane %v608, 4
        %v611 = vshll.u32 %v514, 16
        %v613 = vrot.slane %v611, 5
        %v614 = vsel %vm255, %v609, %v613
        %v616 = vshrl.u32 %v515, 16
        %v618 = vrot.slane %v616, 4
        %v619 = vshll.u32 %v515, 16
        %v621 = vrot.slane %v619, 5
        %v622 = vor.u32 %v618, %v621
        %v623 = vrot.slane %v622, 4
        %v625 = vshll.u32 %v516, 16
        %v627 = vrot.slane %v625, 5
        %v628 = vsel %vm255, %v623, %v627
        %629 = vrot.lane.b32.xlu0 %v530, 40
        %v630 = vpop.permute.xlu0 %629
        %631 = vrot.lane.b32.xlu0 %v544, 40
        %v632 = vpop.permute.xlu0 %631
        %633 = vrot.lane.b32.xlu0 %v558, 40
        %v634 = vpop.permute.xlu0 %633
        %635 = vrot.lane.b32.xlu0 %v572, 40
        %v636 = vpop.permute.xlu0 %635
        %637 = vrot.lane.b32.xlu0 %v586, 40
        %v638 = vpop.permute.xlu0 %637
        %639 = vrot.lane.b32.xlu0 %v600, 40
        %v640 = vpop.permute.xlu0 %639
        %641 = vrot.lane.b32.xlu0 %v614, 40
        %v642 = vpop.permute.xlu0 %641
        %643 = vrot.lane.b32.xlu0 %v628, 40
        %v644 = vpop.permute.xlu0 %643
        %vm653 = vcmask 388416
        %654 = vst.msk [vmem:[#allocation2] sm:$0xf] %vm653, %v630
        %655 = vst.msk [vmem:[#allocation2 + $0x4] sm:$0xf] %vm653, %v632
        %656 = vst.msk [vmem:[#allocation2 + $0x8] sm:$0xf] %vm653, %v634
        %657 = vst.msk [vmem:[#allocation2 + $0xc] sm:$0xf] %vm653, %v636
        %658 = vst.msk [vmem:[#allocation2 + $0x10] sm:$0xf] %vm653, %v638
        %659 = vst.msk [vmem:[#allocation2 + $0x14] sm:$0xf] %vm653, %v640
        %660 = vst.msk [vmem:[#allocation2 + $0x18] sm:$0xf] %vm653, %v642
        %661 = vst.msk [vmem:[#allocation2 + $0x1c] sm:$0xf] %vm653, %v644
        %s662 = scalar_lea.vmem %s168, 32
        %v663 = vld [vmem:[%s662] sm:$0xf]
        %v664 = vld [vmem:[%s662 + $0x20] sm:$0xf]
        %v665 = vld [vmem:[%s662 + $0x40] sm:$0xf]
        %v666 = vld [vmem:[%s662 + $0x60] sm:$0xf]
        %v667 = vld [vmem:[%s662 + $0x80] sm:$0xf]
        %v668 = vld [vmem:[%s662 + $0xa0] sm:$0xf]
        %v669 = vld [vmem:[%s662 + $0xc0] sm:$0xf]
        %v670 = vld [vmem:[%s662 + $0xe0] sm:$0xf]
        %679 = vrot.lane.b32.xlu0 %v663, 48
        %v680 = vpop.permute.xlu0 %679
        %681 = vrot.lane.b32.xlu0 %v664, 48
        %v682 = vpop.permute.xlu0 %681
        %683 = vrot.lane.b32.xlu0 %v665, 48
        %v684 = vpop.permute.xlu0 %683
        %685 = vrot.lane.b32.xlu0 %v666, 48
        %v686 = vpop.permute.xlu0 %685
        %687 = vrot.lane.b32.xlu0 %v667, 48
        %v688 = vpop.permute.xlu0 %687
        %689 = vrot.lane.b32.xlu0 %v668, 48
        %v690 = vpop.permute.xlu0 %689
        %691 = vrot.lane.b32.xlu0 %v669, 48
        %v692 = vpop.permute.xlu0 %691
        %693 = vrot.lane.b32.xlu0 %v670, 48
        %v694 = vpop.permute.xlu0 %693
        %vm703 = vcmask 454016
        %704 = vst.msk [vmem:[#allocation2] sm:$0xf] %vm703, %v680
        %705 = vst.msk [vmem:[#allocation2 + $0x4] sm:$0xf] %vm703, %v682
        %706 = vst.msk [vmem:[#allocation2 + $0x8] sm:$0xf] %vm703, %v684
        %707 = vst.msk [vmem:[#allocation2 + $0xc] sm:$0xf] %vm703, %v686
        %708 = vst.msk [vmem:[#allocation2 + $0x10] sm:$0xf] %vm703, %v688
        %709 = vst.msk [vmem:[#allocation2 + $0x14] sm:$0xf] %vm703, %v690
        %710 = vst.msk [vmem:[#allocation2 + $0x18] sm:$0xf] %vm703, %v692
        %711 = vst.msk [vmem:[#allocation2 + $0x1c] sm:$0xf] %vm703, %v694
        %s712 = scalar_lea.vmem %s168, 40
        %v713 = vld [vmem:[%s712] sm:$0xf]
        %v714 = vld [vmem:[%s712 + $0x20] sm:$0xf]
        %v715 = vld [vmem:[%s712 + $0x40] sm:$0xf]
        %v716 = vld [vmem:[%s712 + $0x60] sm:$0xf]
        %v717 = vld [vmem:[%s712 + $0x80] sm:$0xf]
        %v718 = vld [vmem:[%s712 + $0xa0] sm:$0xf]
        %v719 = vld [vmem:[%s712 + $0xc0] sm:$0xf]
        %v720 = vld [vmem:[%s712 + $0xe0] sm:$0xf]
        %729 = vrot.lane.b32.xlu0 %v713, 56
        %v730 = vpop.permute.xlu0 %729
        %731 = vrot.lane.b32.xlu0 %v714, 56
        %v732 = vpop.permute.xlu0 %731
        %733 = vrot.lane.b32.xlu0 %v715, 56
        %v734 = vpop.permute.xlu0 %733
        %735 = vrot.lane.b32.xlu0 %v716, 56
        %v736 = vpop.permute.xlu0 %735
        %737 = vrot.lane.b32.xlu0 %v717, 56
        %v738 = vpop.permute.xlu0 %737
        %739 = vrot.lane.b32.xlu0 %v718, 56
        %v740 = vpop.permute.xlu0 %739
        %741 = vrot.lane.b32.xlu0 %v719, 56
        %v742 = vpop.permute.xlu0 %741
        %743 = vrot.lane.b32.xlu0 %v720, 56
        %v744 = vpop.permute.xlu0 %743
        %vm753 = vcmask 519616
        %754 = vst.msk [vmem:[#allocation2] sm:$0xf] %vm753, %v730
        %755 = vst.msk [vmem:[#allocation2 + $0x4] sm:$0xf] %vm753, %v732
        %756 = vst.msk [vmem:[#allocation2 + $0x8] sm:$0xf] %vm753, %v734
        %757 = vst.msk [vmem:[#allocation2 + $0xc] sm:$0xf] %vm753, %v736
        %758 = vst.msk [vmem:[#allocation2 + $0x10] sm:$0xf] %vm753, %v738
        %759 = vst.msk [vmem:[#allocation2 + $0x14] sm:$0xf] %vm753, %v740
        %760 = vst.msk [vmem:[#allocation2 + $0x18] sm:$0xf] %vm753, %v742
        %761 = vst.msk [vmem:[#allocation2 + $0x1c] sm:$0xf] %vm753, %v744
        %v762 = vld [vmem:[%s662] sm:$0xf]
        %v763 = vld [vmem:[%s662 + $0x4] sm:$0x1]
        %v764 = vld [vmem:[%s662 + $0x20] sm:$0xf]
        %v765 = vld [vmem:[%s662 + $0x24] sm:$0x1]
        %v766 = vld [vmem:[%s662 + $0x40] sm:$0xf]
        %v767 = vld [vmem:[%s662 + $0x44] sm:$0x1]
        %v768 = vld [vmem:[%s662 + $0x60] sm:$0xf]
        %v769 = vld [vmem:[%s662 + $0x64] sm:$0x1]
        %v770 = vld [vmem:[%s662 + $0x80] sm:$0xf]
        %v771 = vld [vmem:[%s662 + $0x84] sm:$0x1]
        %v772 = vld [vmem:[%s662 + $0xa0] sm:$0xf]
        %v773 = vld [vmem:[%s662 + $0xa4] sm:$0x1]
        %v774 = vld [vmem:[%s662 + $0xc0] sm:$0xf]
        %v775 = vld [vmem:[%s662 + $0xc4] sm:$0x1]
        %v776 = vld [vmem:[%s662 + $0xe0] sm:$0xf]
        %v777 = vld [vmem:[%s662 + $0xe4] sm:$0x1]
        %v779 = vshrl.u32 %v762, 16
        %v781 = vrot.slane %v779, 4
        %v782 = vshll.u32 %v762, 16
        %v784 = vrot.slane %v782, 5
        %v785 = vor.u32 %v781, %v784
        %v786 = vrot.slane %v785, 4
        %v788 = vshll.u32 %v763, 16
        %v790 = vrot.slane %v788, 5
        %v791 = vsel %vm255, %v786, %v790
        %v793 = vshrl.u32 %v764, 16
        %v795 = vrot.slane %v793, 4
        %v796 = vshll.u32 %v764, 16
        %v798 = vrot.slane %v796, 5
        %v799 = vor.u32 %v795, %v798
        %v800 = vrot.slane %v799, 4
        %v802 = vshll.u32 %v765, 16
        %v804 = vrot.slane %v802, 5
        %v805 = vsel %vm255, %v800, %v804
        %v807 = vshrl.u32 %v766, 16
        %v809 = vrot.slane %v807, 4
        %v810 = vshll.u32 %v766, 16
        %v812 = vrot.slane %v810, 5
        %v813 = vor.u32 %v809, %v812
        %v814 = vrot.slane %v813, 4
        %v816 = vshll.u32 %v767, 16
        %v818 = vrot.slane %v816, 5
        %v819 = vsel %vm255, %v814, %v818
        %v821 = vshrl.u32 %v768, 16
        %v823 = vrot.slane %v821, 4
        %v824 = vshll.u32 %v768, 16
        %v826 = vrot.slane %v824, 5
        %v827 = vor.u32 %v823, %v826
        %v828 = vrot.slane %v827, 4
        %v830 = vshll.u32 %v769, 16
        %v832 = vrot.slane %v830, 5
        %v833 = vsel %vm255, %v828, %v832
        %v835 = vshrl.u32 %v770, 16
        %v837 = vrot.slane %v835, 4
        %v838 = vshll.u32 %v770, 16
        %v840 = vrot.slane %v838, 5
        %v841 = vor.u32 %v837, %v840
        %v842 = vrot.slane %v841, 4
        %v844 = vshll.u32 %v771, 16
        %v846 = vrot.slane %v844, 5
        %v847 = vsel %vm255, %v842, %v846
        %v849 = vshrl.u32 %v772, 16
        %v851 = vrot.slane %v849, 4
        %v852 = vshll.u32 %v772, 16
        %v854 = vrot.slane %v852, 5
        %v855 = vor.u32 %v851, %v854
        %v856 = vrot.slane %v855, 4
        %v858 = vshll.u32 %v773, 16
        %v860 = vrot.slane %v858, 5
        %v861 = vsel %vm255, %v856, %v860
        %v863 = vshrl.u32 %v774, 16
        %v865 = vrot.slane %v863, 4
        %v866 = vshll.u32 %v774, 16
        %v868 = vrot.slane %v866, 5
        %v869 = vor.u32 %v865, %v868
        %v870 = vrot.slane %v869, 4
        %v872 = vshll.u32 %v775, 16
        %v874 = vrot.slane %v872, 5
        %v875 = vsel %vm255, %v870, %v874
        %v877 = vshrl.u32 %v776, 16
        %v879 = vrot.slane %v877, 4
        %v880 = vshll.u32 %v776, 16
        %v882 = vrot.slane %v880, 5
        %v883 = vor.u32 %v879, %v882
        %v884 = vrot.slane %v883, 4
        %v886 = vshll.u32 %v777, 16
        %v888 = vrot.slane %v886, 5
        %v889 = vsel %vm255, %v884, %v888
        %890 = vrot.lane.b32.xlu0 %v791, 64
        %v891 = vpop.permute.xlu0 %890
        %892 = vrot.lane.b32.xlu0 %v805, 64
        %v893 = vpop.permute.xlu0 %892
        %894 = vrot.lane.b32.xlu0 %v819, 64
        %v895 = vpop.permute.xlu0 %894
        %896 = vrot.lane.b32.xlu0 %v833, 64
        %v897 = vpop.permute.xlu0 %896
        %898 = vrot.lane.b32.xlu0 %v847, 64
        %v899 = vpop.permute.xlu0 %898
        %900 = vrot.lane.b32.xlu0 %v861, 64
        %v901 = vpop.permute.xlu0 %900
        %902 = vrot.lane.b32.xlu0 %v875, 64
        %v903 = vpop.permute.xlu0 %902
        %904 = vrot.lane.b32.xlu0 %v889, 64
        %v905 = vpop.permute.xlu0 %904
        %vm914 = vcmask 585216
        %915 = vst.msk [vmem:[#allocation2] sm:$0xf] %vm914, %v891
        %916 = vst.msk [vmem:[#allocation2 + $0x4] sm:$0xf] %vm914, %v893
        %917 = vst.msk [vmem:[#allocation2 + $0x8] sm:$0xf] %vm914, %v895
        %918 = vst.msk [vmem:[#allocation2 + $0xc] sm:$0xf] %vm914, %v897
        %919 = vst.msk [vmem:[#allocation2 + $0x10] sm:$0xf] %vm914, %v899
        %920 = vst.msk [vmem:[#allocation2 + $0x14] sm:$0xf] %vm914, %v901
        %921 = vst.msk [vmem:[#allocation2 + $0x18] sm:$0xf] %vm914, %v903
        %922 = vst.msk [vmem:[#allocation2 + $0x1c] sm:$0xf] %vm914, %v905
        %v923 = vld [vmem:[#allocation2] sm:$0xf]
        %v924 = vld [vmem:[#allocation2 + $0x4] sm:$0xf]
        %v925 = vld [vmem:[#allocation2 + $0x8] sm:$0xf]
        %v926 = vld [vmem:[#allocation2 + $0xc] sm:$0xf]
        %v927 = vld [vmem:[#allocation2 + $0x10] sm:$0xf]
        %v928 = vld [vmem:[#allocation2 + $0x14] sm:$0xf]
        %v929 = vld [vmem:[#allocation2 + $0x18] sm:$0xf]
        %v930 = vld [vmem:[#allocation2 + $0x1c] sm:$0xf]
        %v931 = vld [vmem:[%s1] sm:$0xf]
        %v932 = vld [vmem:[%s1 + $0x4] sm:$0xf]
        %v933 = vld [vmem:[%s1 + $0x8] sm:$0xf]
        %v934 = vld [vmem:[%s1 + $0xc] sm:$0xf]
        %v935 = vld [vmem:[%s1 + $0x10] sm:$0xf]
        %v936 = vld [vmem:[%s1 + $0x14] sm:$0xf]
        %v937 = vld [vmem:[%s1 + $0x18] sm:$0xf]
        %v938 = vld [vmem:[%s1 + $0x1c] sm:$0xf]
        %v939 = vld [vmem:[%s1 + $0x20] sm:$0xf]
        %v940 = vld [vmem:[%s2] sm:$0x1]
        %v942 = vlaneseq
        %v943 = vshrl.u32 %v942, 7
        %v944 = vsub.s32 0, %v943
        %v945 = vrot.slane %v940, %v944
        %v955 = vunpack.c.l.b16 %v923
        %v956 = vunpack.c.l.b16 %v924
        %v957 = vunpack.c.l.b16 %v925
        %v958 = vunpack.c.l.b16 %v926
        %v959 = vunpack.c.l.b16 %v927
        %v960 = vunpack.c.l.b16 %v928
        %v961 = vunpack.c.l.b16 %v929
        %v962 = vunpack.c.l.b16 %v930
        %v963 = vpack.c.b16 %v956, %v955
        %v964 = vpack.c.b16 %v958, %v957
        %v965 = vpack.c.b16 %v960, %v959
        %v966 = vpack.c.b16 %v962, %v961
        %v976 = vunpack.c.l.b16 %v931
        %v977 = vunpack.c.l.b16 %v932
        %v978 = vunpack.c.l.b16 %v933
        %v979 = vunpack.c.l.b16 %v934
        %v980 = vunpack.c.l.b16 %v935
        %v981 = vunpack.c.l.b16 %v936
        %v982 = vunpack.c.l.b16 %v937
        %v983 = vunpack.c.l.b16 %v938
        %v984 = vunpack.c.l.b16 %v939
        %v985 = vpack.c.b16 %v977, %v976
        %v986 = vpack.c.b16 %v979, %v978
        %v987 = vpack.c.b16 %v981, %v980
        %v988 = vpack.c.b16 %v983, %v982
        %v989 = vpack.c.b16 %v984, %v984
        %vm994 = vcmask 588800
        %v996 = vsel %vm994, %v963, 0
        %v999 = vsel %vm994, %v964, 0
        %v1002 = vsel %vm994, %v965, 0
        %v1005 = vsel %vm994, %v966, 0
        %vm1007 = vcmask 1043456
        %v1009 = vsel %vm1007, %v989, 0
        %1011 = vmatprep.subr.bf16.mxu0 0
        %1012 = vmatpush1.bf16.msra.mxu0 0
        %1013 = vmatprep.subr.bf16.mxu0 0
        %1014 = vmatpush1.bf16.msra.mxu0 0
        %1015 = vmatprep.subr.bf16.mxu0 0
        %1016 = vmatpush1.bf16.msra.mxu0 0
        %1017 = vmatprep.subr.bf16.mxu0 0
        %1018 = vmatpush1.bf16.msra.mxu0 %v1009
        %1019 = vmatprep.subr.bf16.mxu0 0
        %1020 = vmatpush1.bf16.msra.mxu0 %v988
        %1021 = vmatprep.subr.bf16.mxu0 0
        %1022 = vmatpush1.bf16.msra.mxu0 %v987
        %1023 = vmatprep.subr.bf16.mxu0 0
        %1024 = vmatpush1.bf16.msra.mxu0 %v986
        %1025 = vmatprep.subr.bf16.mxu0 0
        %1026 = vmatpush1.bf16.msra.mxu0 %v985
        %1027 = vmatprep.subr.bf16.mxu0 0
        %1028 = vmatpush2.bf16.msra.mxu0 0
        %1029 = vmatprep.subr.bf16.mxu0 0
        %1030 = vmatpush2.bf16.msra.mxu0 0
        %1031 = vmatprep.subr.bf16.mxu0 0
        %1032 = vmatpush2.bf16.msra.mxu0 0
        %1033 = vmatprep.subr.bf16.mxu0 0
        %1034 = vmatpush2.bf16.msra.mxu0 0
        %1035 = vmatprep.subr.bf16.mxu0 0
        %1036 = vmatpush2.bf16.msra.mxu0 0
        %1037 = vmatprep.subr.bf16.mxu0 0
        %1038 = vmatpush2.bf16.msra.mxu0 0
        %1039 = vmatprep.subr.bf16.mxu0 0
        %1040 = vmatpush2.bf16.msra.mxu0 0
        %1041 = vmatprep.subr.bf16.mxu0 0
        %1042 = vmatpush2.bf16.msra.mxu0 0
        %1043 = vmatprep.mubr.bf16.mxu0 0
        %1044 = vmatmul.mubr.bf16.gmra.mxu0 %v996
        %v1045 = vpop.f32.mrf.mxu0
        %v1046 = vadd.f32 %v945, %v1045
        %v1047 = vpop.f32.mrf.mxu0
        %v1048 = vpop.f32.mrf.mxu0
        %v1049 = vadd.f32 %v945, %v1048
        %v1050 = vpop.f32.mrf.mxu0
        %1051 = vmatprep.mubr.bf16.mxu0 0
        %1052 = vmatmul.mubr.bf16.gmra.mxu0 %v999
        %v1053 = vpop.f32.mrf.mxu0
        %v1054 = vadd.f32 %v945, %v1053
        %v1055 = vpop.f32.mrf.mxu0
        %v1056 = vpop.f32.mrf.mxu0
        %v1057 = vadd.f32 %v945, %v1056
        %v1058 = vpop.f32.mrf.mxu0
        %1059 = vmatprep.mubr.bf16.mxu0 0
        %1060 = vmatmul.mubr.bf16.gmra.mxu0 %v1002
        %v1061 = vpop.f32.mrf.mxu0
        %v1062 = vadd.f32 %v945, %v1061
        %v1063 = vpop.f32.mrf.mxu0
        %v1064 = vpop.f32.mrf.mxu0
        %v1065 = vadd.f32 %v945, %v1064
        %v1066 = vpop.f32.mrf.mxu0
        %1067 = vmatprep.mubr.bf16.mxu0 0
        %1068 = vmatmul.mubr.bf16.gmra.mxu0 %v1005
        %v1069 = vpop.f32.mrf.mxu0
        %v1070 = vadd.f32 %v945, %v1069
        %v1071 = vpop.f32.mrf.mxu0
        %v1072 = vpop.f32.mrf.mxu0
        %v1073 = vadd.f32 %v945, %v1072
        %v1074 = vpop.f32.mrf.mxu0
        %1075 = vdwg.mxu0
        %v1076 = vmax.f32 %v1046, 0.0
        %v1077 = vmax.f32 %v1049, 0.0
        %v1078 = vmax.f32 %v1054, 0.0
        %v1079 = vmax.f32 %v1057, 0.0
        %v1080 = vmax.f32 %v1062, 0.0
        %v1081 = vmax.f32 %v1065, 0.0
        %v1082 = vmax.f32 %v1070, 0.0
        %v1083 = vmax.f32 %v1073, 0.0
        %v1084 = vpack.c.bf16 %v1077, %v1076
        %v1085 = vpack.c.bf16 %v1079, %v1078
        %v1086 = vpack.c.bf16 %v1081, %v1080
        %v1087 = vpack.c.bf16 %v1083, %v1082
        %v1092 = vunpack.c.l.b16 %v1084
        %v1093 = vunpack.c.h.b16 %v1084
        %v1094 = vunpack.c.l.b16 %v1085
        %v1095 = vunpack.c.h.b16 %v1085
        %v1096 = vunpack.c.l.b16 %v1086
        %v1097 = vunpack.c.h.b16 %v1086
        %v1098 = vunpack.c.l.b16 %v1087
        %v1099 = vunpack.c.h.b16 %v1087
        %v1100 = vpack.c.b16 %v1092, %v1092
        %v1101 = vpack.c.b16 %v1093, %v1093
        %v1102 = vpack.c.b16 %v1094, %v1094
        %v1103 = vpack.c.b16 %v1095, %v1095
        %v1104 = vpack.c.b16 %v1096, %v1096
        %v1105 = vpack.c.b16 %v1097, %v1097
        %v1106 = vpack.c.b16 %v1098, %v1098
        %v1107 = vpack.c.b16 %v1099, %v1099
        %vm1116 = vcmask 125952
        %1117 = vst.msk [vmem:[#allocation3] sm:$0xf] %vm1116, %v1100
        %1118 = vst.msk [vmem:[#allocation3 + $0x4] sm:$0xf] %vm1116, %v1101
        %1119 = vst.msk [vmem:[#allocation3 + $0x8] sm:$0xf] %vm1116, %v1102
        %1120 = vst.msk [vmem:[#allocation3 + $0xc] sm:$0xf] %vm1116, %v1103
        %1121 = vst.msk [vmem:[#allocation3 + $0x10] sm:$0xf] %vm1116, %v1104
        %1122 = vst.msk [vmem:[#allocation3 + $0x14] sm:$0xf] %vm1116, %v1105
        %1123 = vst.msk [vmem:[#allocation3 + $0x18] sm:$0xf] %vm1116, %v1106
        %1124 = vst.msk [vmem:[#allocation3 + $0x1c] sm:$0xf] %vm1116, %v1107
        %v1125 = vld [vmem:[#allocation3] sm:$0x1]
        %v1126 = vld [vmem:[#allocation3 + $0x4] sm:$0x1]
        %v1127 = vld [vmem:[#allocation3 + $0x8] sm:$0x1]
        %v1128 = vld [vmem:[#allocation3 + $0xc] sm:$0x1]
        %v1129 = vld [vmem:[#allocation3 + $0x10] sm:$0x1]
        %v1130 = vld [vmem:[#allocation3 + $0x14] sm:$0x1]
        %v1131 = vld [vmem:[#allocation3 + $0x18] sm:$0x1]
        %v1132 = vld [vmem:[#allocation3 + $0x1c] sm:$0x1]
        %v1141 = vunpack.c.l.b16 %v1125
        %v1142 = vunpack.c.l.b16 %v1126
        %v1143 = vunpack.c.l.b16 %v1127
        %v1144 = vunpack.c.l.b16 %v1128
        %v1145 = vunpack.c.l.b16 %v1129
        %v1146 = vunpack.c.l.b16 %v1130
        %v1147 = vunpack.c.l.b16 %v1131
        %v1148 = vunpack.c.l.b16 %v1132
        %v1149 = vrot.slane %v1142, 7
        %vm1150 = vcmask 1041409
        %v1151 = vsel %vm1150, %v1149, %v1141
        %v1152 = vrot.slane %v1143, 6
        %vm1153 = vcmask 1042434
        %v1154 = vsel %vm1153, %v1152, %v1151
        %v1155 = vrot.slane %v1144, 5
        %vm1156 = vcmask 1043459
        %v1157 = vsel %vm1156, %v1155, %v1154
        %v1158 = vrot.slane %v1145, 4
        %vm1159 = vcmask 1044484
        %v1160 = vsel %vm1159, %v1158, %v1157
        %v1161 = vrot.slane %v1146, 3
        %vm1162 = vcmask 1045509
        %v1163 = vsel %vm1162, %v1161, %v1160
        %v1164 = vrot.slane %v1147, 2
        %vm1165 = vcmask 1046534
        %v1166 = vsel %vm1165, %v1164, %v1163
        %v1167 = vrot.slane %v1148, 1
        %vm1168 = vcmask 1047559
        %v1169 = vsel %vm1168, %v1167, %v1166
        %v1170 = vpack.c.b16 %v1169, %v1169
        %1172 = vst.msk [vmem:[%s163] sm:$0xf] %vm1116, %v1170
        %v1173 = vld [vmem:[#allocation3] sm:$0x1]
        %v1174 = vld [vmem:[#allocation3 + $0x4] sm:$0x1]
        %v1175 = vld [vmem:[#allocation3 + $0x8] sm:$0x1]
        %v1176 = vld [vmem:[#allocation3 + $0xc] sm:$0x1]
        %v1177 = vld [vmem:[#allocation3 + $0x10] sm:$0x1]
        %v1178 = vld [vmem:[#allocation3 + $0x14] sm:$0x1]
        %v1179 = vld [vmem:[#allocation3 + $0x18] sm:$0x1]
        %v1180 = vld [vmem:[#allocation3 + $0x1c] sm:$0x1]
        %v1189 = vunpack.c.l.b16 %v1173
        %v1190 = vunpack.c.l.b16 %v1174
        %v1191 = vunpack.c.l.b16 %v1175
        %v1192 = vunpack.c.l.b16 %v1176
        %v1193 = vunpack.c.l.b16 %v1177
        %v1194 = vunpack.c.l.b16 %v1178
        %v1195 = vunpack.c.l.b16 %v1179
        %v1196 = vunpack.c.l.b16 %v1180
        %v1197 = vrot.slane %v1189, 1
        %v1198 = vsel %vm1150, %v1190, %v1197
        %v1199 = vrot.slane %v1191, 7
        %v1200 = vsel %vm1153, %v1199, %v1198
        %v1201 = vrot.slane %v1192, 6
        %v1202 = vsel %vm1156, %v1201, %v1200
        %v1203 = vrot.slane %v1193, 5
        %v1204 = vsel %vm1159, %v1203, %v1202
        %v1205 = vrot.slane %v1194, 4
        %v1206 = vsel %vm1162, %v1205, %v1204
        %v1207 = vrot.slane %v1195, 3
        %v1208 = vsel %vm1165, %v1207, %v1206
        %v1209 = vrot.slane %v1196, 2
        %v1210 = vsel %vm1168, %v1209, %v1208
        %v1211 = vpack.c.b16 %v1210, %v1210
        %1212 = vrot.lane.b32.xlu0 %v1211, 16
        %v1213 = vpop.permute.xlu0 %1212
        %vm1215 = vcmask 257152
        %1216 = vst.msk [vmem:[%s163] sm:$0xf] %vm1215, %v1213
        %v1217 = vld [vmem:[#allocation3] sm:$0x2]
        %v1218 = vld [vmem:[#allocation3 + $0x4] sm:$0x2]
        %v1219 = vld [vmem:[#allocation3 + $0x8] sm:$0x2]
        %v1220 = vld [vmem:[#allocation3 + $0xc] sm:$0x2]
        %v1221 = vld [vmem:[#allocation3 + $0x10] sm:$0x2]
        %v1222 = vld [vmem:[#allocation3 + $0x14] sm:$0x2]
        %v1223 = vld [vmem:[#allocation3 + $0x18] sm:$0x2]
        %v1224 = vld [vmem:[#allocation3 + $0x1c] sm:$0x2]
        %v1233 = vunpack.c.l.b16 %v1217
        %v1234 = vunpack.c.l.b16 %v1218
        %v1235 = vunpack.c.l.b16 %v1219
        %v1236 = vunpack.c.l.b16 %v1220
        %v1237 = vunpack.c.l.b16 %v1221
        %v1238 = vunpack.c.l.b16 %v1222
        %v1239 = vunpack.c.l.b16 %v1223
        %v1240 = vunpack.c.l.b16 %v1224
        %v1241 = vrot.slane %v1233, 2
        %v1242 = vrot.slane %v1234, 1
        %v1243 = vsel %vm1150, %v1242, %v1241
        %v1244 = vsel %vm1153, %v1235, %v1243
        %v1245 = vrot.slane %v1236, 7
        %v1246 = vsel %vm1156, %v1245, %v1244
        %v1247 = vrot.slane %v1237, 6
        %v1248 = vsel %vm1159, %v1247, %v1246
        %v1249 = vrot.slane %v1238, 5
        %v1250 = vsel %vm1162, %v1249, %v1248
        %v1251 = vrot.slane %v1239, 4
        %v1252 = vsel %vm1165, %v1251, %v1250
        %v1253 = vrot.slane %v1240, 3
        %v1254 = vsel %vm1168, %v1253, %v1252
        %v1255 = vpack.c.b16 %v1254, %v1254
        %1256 = vrot.lane.b32.xlu0 %v1255, 32
        %v1257 = vpop.permute.xlu0 %1256
        %vm1259 = vcmask 388352
        %1260 = vst.msk [vmem:[%s163] sm:$0xf] %vm1259, %v1257
        %v1261 = vld [vmem:[#allocation3] sm:$0x2]
        %v1262 = vld [vmem:[#allocation3 + $0x4] sm:$0x2]
        %v1263 = vld [vmem:[#allocation3 + $0x8] sm:$0x2]
        %v1264 = vld [vmem:[#allocation3 + $0xc] sm:$0x2]
        %v1265 = vld [vmem:[#allocation3 + $0x10] sm:$0x2]
        %v1266 = vld [vmem:[#allocation3 + $0x14] sm:$0x2]
        %v1267 = vld [vmem:[#allocation3 + $0x18] sm:$0x2]
        %v1268 = vld [vmem:[#allocation3 + $0x1c] sm:$0x2]
        %v1277 = vunpack.c.l.b16 %v1261
        %v1278 = vunpack.c.l.b16 %v1262
        %v1279 = vunpack.c.l.b16 %v1263
        %v1280 = vunpack.c.l.b16 %v1264
        %v1281 = vunpack.c.l.b16 %v1265
        %v1282 = vunpack.c.l.b16 %v1266
        %v1283 = vunpack.c.l.b16 %v1267
        %v1284 = vunpack.c.l.b16 %v1268
        %v1285 = vrot.slane %v1277, 3
        %v1286 = vrot.slane %v1278, 2
        %v1287 = vsel %vm1150, %v1286, %v1285
        %v1288 = vrot.slane %v1279, 1
        %v1289 = vsel %vm1153, %v1288, %v1287
        %v1290 = vsel %vm1156, %v1280, %v1289
        %v1291 = vrot.slane %v1281, 7
        %v1292 = vsel %vm1159, %v1291, %v1290
        %v1293 = vrot.slane %v1282, 6
        %v1294 = vsel %vm1162, %v1293, %v1292
        %v1295 = vrot.slane %v1283, 5
        %v1296 = vsel %vm1165, %v1295, %v1294
        %v1297 = vrot.slane %v1284, 4
        %v1298 = vsel %vm1168, %v1297, %v1296
        %v1299 = vpack.c.b16 %v1298, %v1298
        %1300 = vrot.lane.b32.xlu0 %v1299, 48
        %v1301 = vpop.permute.xlu0 %1300
        %vm1303 = vcmask 519552
        %1304 = vst.msk [vmem:[%s163] sm:$0xf] %vm1303, %v1301
        %v1305 = vld [vmem:[#allocation3] sm:$0x4]
        %v1306 = vld [vmem:[#allocation3 + $0x4] sm:$0x4]
        %v1307 = vld [vmem:[#allocation3 + $0x8] sm:$0x4]
        %v1308 = vld [vmem:[#allocation3 + $0xc] sm:$0x4]
        %v1309 = vld [vmem:[#allocation3 + $0x10] sm:$0x4]
        %v1310 = vld [vmem:[#allocation3 + $0x14] sm:$0x4]
        %v1311 = vld [vmem:[#allocation3 + $0x18] sm:$0x4]
        %v1312 = vld [vmem:[#allocation3 + $0x1c] sm:$0x4]
        %v1321 = vunpack.c.l.b16 %v1305
        %v1322 = vunpack.c.l.b16 %v1306
        %v1323 = vunpack.c.l.b16 %v1307
        %v1324 = vunpack.c.l.b16 %v1308
        %v1325 = vunpack.c.l.b16 %v1309
        %v1326 = vunpack.c.l.b16 %v1310
        %v1327 = vunpack.c.l.b16 %v1311
        %v1328 = vunpack.c.l.b16 %v1312
        %v1329 = vrot.slane %v1321, 4
        %v1330 = vrot.slane %v1322, 3
        %v1331 = vsel %vm1150, %v1330, %v1329
        %v1332 = vrot.slane %v1323, 2
        %v1333 = vsel %vm1153, %v1332, %v1331
        %v1334 = vrot.slane %v1324, 1
        %v1335 = vsel %vm1156, %v1334, %v1333
        %v1336 = vsel %vm1159, %v1325, %v1335
        %v1337 = vrot.slane %v1326, 7
        %v1338 = vsel %vm1162, %v1337, %v1336
        %v1339 = vrot.slane %v1327, 6
        %v1340 = vsel %vm1165, %v1339, %v1338
        %v1341 = vrot.slane %v1328, 5
        %v1342 = vsel %vm1168, %v1341, %v1340
        %v1343 = vpack.c.b16 %v1342, %v1342
        %1344 = vrot.lane.b32.xlu0 %v1343, 64
        %v1345 = vpop.permute.xlu0 %1344
        %vm1347 = vcmask 650752
        %1348 = vst.msk [vmem:[%s163] sm:$0xf] %vm1347, %v1345
        %v1349 = vld [vmem:[#allocation3] sm:$0x4]
        %v1350 = vld [vmem:[#allocation3 + $0x4] sm:$0x4]
        %v1351 = vld [vmem:[#allocation3 + $0x8] sm:$0x4]
        %v1352 = vld [vmem:[#allocation3 + $0xc] sm:$0x4]
        %v1353 = vld [vmem:[#allocation3 + $0x10] sm:$0x4]
        %v1354 = vld [vmem:[#allocation3 + $0x14] sm:$0x4]
        %v1355 = vld [vmem:[#allocation3 + $0x18] sm:$0x4]
        %v1356 = vld [vmem:[#allocation3 + $0x1c] sm:$0x4]
        %v1365 = vunpack.c.l.b16 %v1349
        %v1366 = vunpack.c.l.b16 %v1350
        %v1367 = vunpack.c.l.b16 %v1351
        %v1368 = vunpack.c.l.b16 %v1352
        %v1369 = vunpack.c.l.b16 %v1353
        %v1370 = vunpack.c.l.b16 %v1354
        %v1371 = vunpack.c.l.b16 %v1355
        %v1372 = vunpack.c.l.b16 %v1356
        %v1373 = vrot.slane %v1365, 5
        %v1374 = vrot.slane %v1366, 4
        %v1375 = vsel %vm1150, %v1374, %v1373
        %v1376 = vrot.slane %v1367, 3
        %v1377 = vsel %vm1153, %v1376, %v1375
        %v1378 = vrot.slane %v1368, 2
        %v1379 = vsel %vm1156, %v1378, %v1377
        %v1380 = vrot.slane %v1369, 1
        %v1381 = vsel %vm1159, %v1380, %v1379
        %v1382 = vsel %vm1162, %v1370, %v1381
        %v1383 = vrot.slane %v1371, 7
        %v1384 = vsel %vm1165, %v1383, %v1382
        %v1385 = vrot.slane %v1372, 6
        %v1386 = vsel %vm1168, %v1385, %v1384
        %v1387 = vpack.c.b16 %v1386, %v1386
        %1388 = vrot.lane.b32.xlu0 %v1387, 80
        %v1389 = vpop.permute.xlu0 %1388
        %vm1391 = vcmask 781952
        %1392 = vst.msk [vmem:[%s163] sm:$0xf] %vm1391, %v1389
        %v1393 = vld [vmem:[#allocation3] sm:$0x8]
        %v1394 = vld [vmem:[#allocation3 + $0x4] sm:$0x8]
        %v1395 = vld [vmem:[#allocation3 + $0x8] sm:$0x8]
        %v1396 = vld [vmem:[#allocation3 + $0xc] sm:$0x8]
        %v1397 = vld [vmem:[#allocation3 + $0x10] sm:$0x8]
        %v1398 = vld [vmem:[#allocation3 + $0x14] sm:$0x8]
        %v1399 = vld [vmem:[#allocation3 + $0x18] sm:$0x8]
        %v1400 = vld [vmem:[#allocation3 + $0x1c] sm:$0x8]
        %v1409 = vunpack.c.l.b16 %v1393
        %v1410 = vunpack.c.l.b16 %v1394
        %v1411 = vunpack.c.l.b16 %v1395
        %v1412 = vunpack.c.l.b16 %v1396
        %v1413 = vunpack.c.l.b16 %v1397
        %v1414 = vunpack.c.l.b16 %v1398
        %v1415 = vunpack.c.l.b16 %v1399
        %v1416 = vunpack.c.l.b16 %v1400
        %v1417 = vrot.slane %v1409, 6
        %v1418 = vrot.slane %v1410, 5
        %v1419 = vsel %vm1150, %v1418, %v1417
        %v1420 = vrot.slane %v1411, 4
        %v1421 = vsel %vm1153, %v1420, %v1419
        %v1422 = vrot.slane %v1412, 3
        %v1423 = vsel %vm1156, %v1422, %v1421
        %v1424 = vrot.slane %v1413, 2
        %v1425 = vsel %vm1159, %v1424, %v1423
        %v1426 = vrot.slane %v1414, 1
        %v1427 = vsel %vm1162, %v1426, %v1425
        %v1428 = vsel %vm1165, %v1415, %v1427
        %v1429 = vrot.slane %v1416, 7
        %v1430 = vsel %vm1168, %v1429, %v1428
        %v1431 = vpack.c.b16 %v1430, %v1430
        %1432 = vrot.lane.b32.xlu0 %v1431, 96
        %v1433 = vpop.permute.xlu0 %1432
        %vm1435 = vcmask 913152
        %1436 = vst.msk [vmem:[%s163] sm:$0xf] %vm1435, %v1433
        %v1437 = vld [vmem:[#allocation3] sm:$0x8]
        %v1438 = vld [vmem:[#allocation3 + $0x4] sm:$0x8]
        %v1439 = vld [vmem:[#allocation3 + $0x8] sm:$0x8]
        %v1440 = vld [vmem:[#allocation3 + $0xc] sm:$0x8]
        %v1441 = vld [vmem:[#allocation3 + $0x10] sm:$0x8]
        %v1442 = vld [vmem:[#allocation3 + $0x14] sm:$0x8]
        %v1443 = vld [vmem:[#allocation3 + $0x18] sm:$0x8]
        %v1444 = vld [vmem:[#allocation3 + $0x1c] sm:$0x8]
        %v1453 = vunpack.c.l.b16 %v1437
        %v1454 = vunpack.c.l.b16 %v1438
        %v1455 = vunpack.c.l.b16 %v1439
        %v1456 = vunpack.c.l.b16 %v1440
        %v1457 = vunpack.c.l.b16 %v1441
        %v1458 = vunpack.c.l.b16 %v1442
        %v1459 = vunpack.c.l.b16 %v1443
        %v1460 = vunpack.c.l.b16 %v1444
        %v1461 = vrot.slane %v1453, 7
        %v1462 = vrot.slane %v1454, 6
        %v1463 = vsel %vm1150, %v1462, %v1461
        %v1464 = vrot.slane %v1455, 5
        %v1465 = vsel %vm1153, %v1464, %v1463
        %v1466 = vrot.slane %v1456, 4
        %v1467 = vsel %vm1156, %v1466, %v1465
        %v1468 = vrot.slane %v1457, 3
        %v1469 = vsel %vm1159, %v1468, %v1467
        %v1470 = vrot.slane %v1458, 2
        %v1471 = vsel %vm1162, %v1470, %v1469
        %v1472 = vrot.slane %v1459, 1
        %v1473 = vsel %vm1165, %v1472, %v1471
        %v1474 = vsel %vm1168, %v1460, %v1473
        %v1475 = vpack.c.b16 %v1474, %v1474
        %1476 = vrot.lane.b32.xlu0 %v1475, 112
        %v1477 = vpop.permute.xlu0 %1476
        %vm1479 = vcmask 1044352
        %1480 = vst.msk [vmem:[%s163] sm:$0xf] %vm1479, %v1477
        %s1481 = sand.u32 %s93, 1
        %s1482 = scalar_lea.sflag [#allocation5], %s1481
        %s1483 = sand.u32 %s93, 1
        %s1484 = smul.addr %s1483, 4
        %s1485 = scalar_lea.vmem [#allocation4], %s1484
        // Predicated region
        $region33: #{tpu_custom_call.1} parent=31 // pred_check
          %p1486 = pneg %p103
        $region34: #{tpu_custom_call.1} parent=31 // pred_check_branch
          %1488 = sbr.rel (%p1486) target = $region36
        $region35: #{tpu_custom_call.1} parent=31 // pred_region
          %s1490 = ssub.s32 64, 64
          %1491 = vsyncadd %s1482, %s1490
          %s1492 = smul.addr %s17, 64
          %s1493 = scalar_lea.hbm %s3, %s1492
          %s1495 = sshll.u32 %s1485, 4
          %s1496 = int_to_ptr.vmem [resolvable:$true] %s1495
          %1498 = dma.vmem_to_hbm [thread:$0]  %s1496, 64, %s1493, %s1482
        $region36: #{tpu_custom_call.1} parent=31 // pred_fallthru
          _
      $region32: #{tpu_custom_call.1} parent=5 // pred_fallthru
        _
      %p1499 = scmp.le.s32.totalorder 2, %s12
      // Predicated region
      $region37: #{tpu_custom_call.1} parent=5 // pred_check
        %p1500 = pneg %p1499
      $region38: #{tpu_custom_call.1} parent=5 // pred_check_branch
        %1502 = sbr.rel (%p1500) target = $region40
      $region39: #{tpu_custom_call.1} parent=5 // pred_region
        %s1503 = ssub.s32 %s12, 2
        // Predicated region
        $region41: #{tpu_custom_call.1} parent=39 // pred_check
          %p1504 = pneg %p109
        $region42: #{tpu_custom_call.1} parent=39 // pred_check_branch
          %1506 = sbr.rel (%p1504) target = $region44
        $region43: #{tpu_custom_call.1} parent=39 // pred_region
          %s1507 = sand.u32 %s94, 1
          %s1508 = scalar_lea.sflag [#allocation5], %s1507
          %s1509 = sand.u32 %s94, 1
          %s1510 = smul.addr %s1509, 4
          %s1511 = scalar_lea.vmem [#allocation4], %s1510
          %1512 = dma.done %s1508, 64
        $region44: #{tpu_custom_call.1} parent=39 // pred_fallthru
          _
      $region40: #{tpu_custom_call.1} parent=5 // pred_fallthru
        _
    $region6: #{tpu_custom_call.1} parent=1 // loop_footer
      %s16 = sadd.s32 1, %s12
    $region7: #{tpu_custom_call.1} parent=1 // loop_footer_branch
      %11 = sbr.rel target = $region3
    $region8: #{tpu_custom_call.1} parent=1 // loop_exit
      _
    %1513 = vsyncpa [#allocation5], 1
    %s1514 = scalar_lea.sflag [#allocation5], 1
    %1515 = vsyncpa %s1514, 1

</llo_original>
